<compile_context>
chip_gen: v6e
topology: v6e:2x2x1
jax: 0.10.0
libtpu: 0.0.40
codegen_flags: <defaults>
</compile_context>

<pallas_src>
import jax
import jax.numpy as jnp
from jax.experimental import pallas as pl
from jax.experimental.pallas import tpu as pltpu


def _siamese_mlp_kernel(f1_ref, f2_ref, w1a_ref, w1b_ref, b1_ref,
                        w2_ref, b2_ref, w3_ref, b3_ref, o_ref):
    # f1,f2:(TB,F) f32|bf16   w1a,w1b:(F,512) bf16   b1:(1,512) f32
    # w2:(512,128) bf16       b2:(1,128) f32
    # w3:(1,128)  bf16        b3:(1,) f32 in SMEM     o:(1,TB) f32
    f1 = f1_ref[...]
    f2 = f2_ref[...]
    if f1.dtype != jnp.bfloat16:
        f1 = f1.astype(jnp.bfloat16)
    if f2.dtype != jnp.bfloat16:
        f2 = f2.astype(jnp.bfloat16)

    # Layer 1 -- concat fused as split-K: two bf16 MXU matmuls, f32 accumulate.
    # TODO(synk): on v6e/v7x with F<=128 a single K=2F matmul (in-VMEM concat)
    # would match the 256-deep MXU; split-K kept so it also suits v5e.
    h1 = (jnp.dot(f1, w1a_ref[...], preferred_element_type=jnp.float32) +
          jnp.dot(f2, w1b_ref[...], preferred_element_type=jnp.float32))
    h1 = jnp.maximum(h1 + b1_ref[...], 0.0)      # ReLU; Dropout(0.3) = eval no-op

    # Layer 2
    h2 = jnp.dot(h1.astype(jnp.bfloat16), w2_ref[...],
                 preferred_element_type=jnp.float32)
    h2 = jnp.maximum(h2 + b2_ref[...], 0.0)      # ReLU; Dropout(0.2) = eval no-op

    # Layer 3 -- lane-dense (1, TB) logit row: contract the 128 hidden dim of
    # w3 (1,128) against h2 (TB,128).  Stores are full-lane vst and the
    # sigmoid runs on TB/128 packed vregs instead of TB/8 single-lane ones.
    logit = jax.lax.dot_general(
        w3_ref[...], h2.astype(jnp.bfloat16),
        dimension_numbers=(((1,), (1,)), ((), ())),
        preferred_element_type=jnp.float32) + b3_ref[0]

    # Numerically-safe sigmoid on the EUP: sigmoid(x) = 0.5*(tanh(x/2)+1).
    o_ref[...] = 0.5 * (jnp.tanh(0.5 * logit) + 1.0)


def prepare_params(params):
    """One-time parameter prep (hoisted out of the forward pass).

    Splits w1 for the fused concat, transposes w3 to a lane-dense row,
    reshapes biases, and casts weights to bf16.
    """
    w1, b1, w2, b2, w3, b3 = params
    F = w1.shape[0] // 2
    return (w1[:F].astype(jnp.bfloat16),                 # w1a (F, 512)
            w1[F:].astype(jnp.bfloat16),                 # w1b (F, 512)
            b1.reshape(1, -1).astype(jnp.float32),       # (1, 512)
            w2.astype(jnp.bfloat16),                     # (512, 128)
            b2.reshape(1, -1).astype(jnp.float32),       # (1, 128)
            w3.T.astype(jnp.bfloat16),                   # (1, 128) lane-dense row
            b3.reshape(1).astype(jnp.float32))           # (1,) -> SMEM scalar


def _pick_batch_tile(B, tb):
    if B > tb:
        assert tb % 128 == 0, "batch tile must be a multiple of 128 when tiling"
        return tb
    if B >= 256:
        # >= 2 grid steps: feeds v7x's 2nd TensorCore and overlaps feature DMA.
        return max(128, (B // 2 // 128) * 128)
    return max(8, -(-B // 8) * 8)                 # single tile, sublane-aligned


def siamese_forward(feat1, feat2, prepared, *, tb=256):
    """feat1, feat2: (B, F) float32 or bfloat16.  Returns (B, 1) float32."""
    w1a, w1b, b1, w2, b2, w3, b3 = prepared
    B, F = feat1.shape
    H1 = w1a.shape[1]       # 512
    H2 = w2.shape[1]        # 128

    TB = _pick_batch_tile(B, tb)
    Bp = pl.cdiv(B, TB) * TB
    if Bp != B:             # ragged batch: zero-pad the tail tile
        feat1 = jnp.pad(feat1, ((0, Bp - B), (0, 0)))
        feat2 = jnp.pad(feat2, ((0, Bp - B), (0, 0)))

    # VMEM budget (covers v5e's 16 MiB default scoped limit): single-buffered
    # bf16 weights + double-buffered feature/output tiles + activation room.
    bpe = jnp.dtype(feat1.dtype).itemsize
    vmem_need = ((2 * F * H1 + H1 * H2 + H2) * 2        # bf16 weights (x1 buf)
                 + 2 * (H1 + H2) * 4                    # biases (x2 bufs)
                 + 2 * 2 * TB * F * bpe                 # feature tiles (x2 bufs)
                 + 2 * TB * 4                           # output tiles (x2 bufs)
                 + 3 * TB * (H1 + H2) * 4)              # h1/h2 live-value headroom
    vmem_limit = int(min(64 << 20, max(32 << 20, 2 * vmem_need)))

    # TODO(synk): for very large F add K-tiling of layer 1 (w1a/w1b would
    # exceed the scoped VMEM limit, especially v7x's 64 MiB); not needed here.
    const_w = lambda shape: pl.BlockSpec(shape, lambda i: (0, 0),
                                         pipeline_mode=pl.Buffered(1))
    const = lambda shape: pl.BlockSpec(shape, lambda i: (0, 0))
    batched = lambda shape: pl.BlockSpec(shape, lambda i: (i, 0))

    out = pl.pallas_call(
        _siamese_mlp_kernel,
        out_shape=jax.ShapeDtypeStruct((1, Bp), jnp.float32),
        grid=(Bp // TB,),
        in_specs=[
            batched((TB, F)), batched((TB, F)),                   # feat1, feat2
            const_w((F, H1)), const_w((F, H1)), const((1, H1)),   # w1a, w1b, b1
            const_w((H1, H2)), const((1, H2)),                    # w2, b2
            const((1, H2)),                                       # w3
            pl.BlockSpec(memory_space=pltpu.MemorySpace.SMEM),    # b3 scalar
        ],
        out_specs=pl.BlockSpec((1, TB), lambda i: (0, i)),        # lane-dense row
        compiler_params=pltpu.CompilerParams(
            dimension_semantics=("parallel",),                    # megacore on v7x
            vmem_limit_bytes=vmem_limit),
    )(feat1, feat2, w1a, w1b, b1, w2, b2, w3, b3)

    return out.reshape(Bp, 1)[:B]


def init_params(key, feature_dim):
    """Deterministic init matching PyTorch Linear shapes (stored transposed)."""
    d_in = feature_dim * 2
    dims = [(d_in, 512), (512, 128), (128, 1)]
    params = []
    for (fi, fo) in dims:
        key, kw, kb = jax.random.split(key, 3)
        bound = 1.0 / jnp.sqrt(fi)
        w = jax.random.uniform(kw, (fi, fo), jnp.float32, -bound, bound)
        b = jax.random.uniform(kb, (fo,), jnp.float32, -bound, bound)
        params += [w, b]
    return tuple(params)


if __name__ == "__main__":
    FEATURE_DIM = 128    # small feature dim (module default is 768)
    BATCH = 256          # -> TB=128, grid=(2,): MXU M filled, 2 steps for v7x

    key = jax.random.PRNGKey(0)
    k1, k2, kp = jax.random.split(key, 3)
    feat1 = jax.random.normal(k1, (BATCH, FEATURE_DIM), jnp.float32)
    feat2 = jax.random.normal(k2, (BATCH, FEATURE_DIM), jnp.float32)
    params = init_params(kp, FEATURE_DIM)
    prepared = prepare_params(params)        # one-time prep, not per-forward

    out = siamese_forward(feat1, feat2, prepared)
    out = jax.block_until_ready(out)

    # Reference in plain JAX using the SAME bf16 weights upcast to f32, so it
    # checks the kernel itself, not the f32->bf16 weight quantization
    # (eval-mode dropout == identity). bf16 matmuls => loose-ish tolerance.
    w1a, w1b, b1, w2, b2, w3, b3 = prepared
    x = jnp.concatenate([feat1, feat2], axis=1)
    w1f = jnp.concatenate([w1a, w1b], axis=0).astype(jnp.float32)
    h = jnp.maximum(x @ w1f + b1, 0.0)
    h = jnp.maximum(h @ w2.astype(jnp.float32) + b2, 0.0)
    ref = jax.nn.sigmoid(h @ w3.astype(jnp.float32).T + b3.reshape(1, 1))

    assert out.shape == (BATCH, 1), out.shape
    assert jnp.allclose(out, ref, atol=2e-2, rtol=2e-2), \
        float(jnp.max(jnp.abs(out - ref)))

    print("KERNEL_OK")
</pallas_src>

<mosaic_0001>
module attributes {stable_mosaic.version = 11 : i64} {
  func.func @_siamese_mlp_kernel(%arg0: i32, %arg1: memref<128x128xf32, #tpu.memory_space<vmem>>, %arg2: memref<128x128xf32, #tpu.memory_space<vmem>>, %arg3: memref<128x512xbf16, #tpu.memory_space<vmem>>, %arg4: memref<128x512xbf16, #tpu.memory_space<vmem>>, %arg5: memref<1x512xf32, #tpu.memory_space<vmem>>, %arg6: memref<512x128xbf16, #tpu.memory_space<vmem>>, %arg7: memref<1x128xf32, #tpu.memory_space<vmem>>, %arg8: memref<1x128xbf16, #tpu.memory_space<vmem>>, %arg9: memref<1xf32, #tpu.memory_space<smem>>, %arg10: memref<1x128xf32, #tpu.memory_space<vmem>>) attributes {dimension_semantics = [#tpu.dimension_semantics<parallel>], iteration_bounds = array<i64: 2>, scalar_prefetch = 0 : i64, scratch_operands = 0 : i64, tpu.core_type = #tpu.core_type<tc>, window_params = [{transform_indices = @transform_0, window_bounds = array<i64: 128, 128>}, {transform_indices = @transform_1, window_bounds = array<i64: 128, 128>}, {pipeline_mode = #tpu.pipeline_mode<synchronous>, transform_indices = @transform_2, window_bounds = array<i64: 128, 512>}, {pipeline_mode = #tpu.pipeline_mode<synchronous>, transform_indices = @transform_3, window_bounds = array<i64: 128, 512>}, {pipeline_mode = #tpu.pipeline_mode<synchronous>, transform_indices = @transform_4, window_bounds = array<i64: 1, 512>}, {pipeline_mode = #tpu.pipeline_mode<synchronous>, transform_indices = @transform_5, window_bounds = array<i64: 512, 128>}, {pipeline_mode = #tpu.pipeline_mode<synchronous>, transform_indices = @transform_6, window_bounds = array<i64: 1, 128>}, {pipeline_mode = #tpu.pipeline_mode<synchronous>, transform_indices = @transform_7, window_bounds = array<i64: 1, 128>}, {transform_indices = @transform_8, window_bounds = array<i64: 1>}, {transform_indices = @transform_9, window_bounds = array<i64: 1, 128>}]} {
    %c0 = arith.constant 0 : index
    %c0_0 = arith.constant 0 : index
    %0 = vector.load %arg1[%c0, %c0_0] : memref<128x128xf32, #tpu.memory_space<vmem>>, vector<128x128xf32>
    %c0_1 = arith.constant 0 : index
    %c0_2 = arith.constant 0 : index
    %1 = vector.load %arg2[%c0_1, %c0_2] : memref<128x128xf32, #tpu.memory_space<vmem>>, vector<128x128xf32>
    %2 = arith.truncf %0 : vector<128x128xf32> to vector<128x128xbf16>
    %3 = arith.truncf %1 : vector<128x128xf32> to vector<128x128xbf16>
    %c0_3 = arith.constant 0 : index
    %c0_4 = arith.constant 0 : index
    %4 = vector.load %arg3[%c0_3, %c0_4] : memref<128x512xbf16, #tpu.memory_space<vmem>>, vector<128x512xbf16>
    %cst = arith.constant dense<0.000000e+00> : vector<128x512xf32>
    %5 = tpu.matmul %2, %4, %cst {dimension_numbers = #tpu.dot_dimension_numbers<[1], [0], [0], [1], [0, 0, 1, 1], [], []>} : vector<128x128xbf16>, vector<128x512xbf16>, vector<128x512xf32> -> vector<128x512xf32>
    %c0_5 = arith.constant 0 : index
    %c0_6 = arith.constant 0 : index
    %6 = vector.load %arg4[%c0_5, %c0_6] : memref<128x512xbf16, #tpu.memory_space<vmem>>, vector<128x512xbf16>
    %cst_7 = arith.constant dense<0.000000e+00> : vector<128x512xf32>
    %7 = tpu.matmul %3, %6, %cst_7 {dimension_numbers = #tpu.dot_dimension_numbers<[1], [0], [0], [1], [0, 0, 1, 1], [], []>} : vector<128x128xbf16>, vector<128x512xbf16>, vector<128x512xf32> -> vector<128x512xf32>
    %8 = arith.addf %5, %7 : vector<128x512xf32>
    %c0_8 = arith.constant 0 : index
    %c0_9 = arith.constant 0 : index
    %9 = vector.load %arg5[%c0_8, %c0_9] : memref<1x512xf32, #tpu.memory_space<vmem>>, vector<1x512xf32>
    %10 = vector.broadcast %9 : vector<1x512xf32> to vector<128x512xf32>
    %11 = arith.addf %8, %10 : vector<128x512xf32>
    %cst_10 = arith.constant 0.000000e+00 : f32
    %12 = vector.broadcast %cst_10 : f32 to vector<128x512xf32>
    %13 = arith.maximumf %11, %12 : vector<128x512xf32>
    %14 = arith.truncf %13 : vector<128x512xf32> to vector<128x512xbf16>
    %c0_11 = arith.constant 0 : index
    %c0_12 = arith.constant 0 : index
    %15 = vector.load %arg6[%c0_11, %c0_12] : memref<512x128xbf16, #tpu.memory_space<vmem>>, vector<512x128xbf16>
    %cst_13 = arith.constant dense<0.000000e+00> : vector<128x128xf32>
    %16 = tpu.matmul %14, %15, %cst_13 {dimension_numbers = #tpu.dot_dimension_numbers<[1], [0], [0], [1], [0, 0, 1, 1], [], []>} : vector<128x512xbf16>, vector<512x128xbf16>, vector<128x128xf32> -> vector<128x128xf32>
    %c0_14 = arith.constant 0 : index
    %c0_15 = arith.constant 0 : index
    %17 = vector.load %arg7[%c0_14, %c0_15] : memref<1x128xf32, #tpu.memory_space<vmem>>, vector<1x128xf32>
    %18 = vector.broadcast %17 : vector<1x128xf32> to vector<128x128xf32>
    %19 = arith.addf %16, %18 : vector<128x128xf32>
    %cst_16 = arith.constant 0.000000e+00 : f32
    %20 = vector.broadcast %cst_16 : f32 to vector<128x128xf32>
    %21 = arith.maximumf %19, %20 : vector<128x128xf32>
    %c0_17 = arith.constant 0 : index
    %c0_18 = arith.constant 0 : index
    %22 = vector.load %arg8[%c0_17, %c0_18] : memref<1x128xbf16, #tpu.memory_space<vmem>>, vector<1x128xbf16>
    %23 = arith.truncf %21 : vector<128x128xf32> to vector<128x128xbf16>
    %cst_19 = arith.constant dense<0.000000e+00> : vector<1x128xf32>
    %24 = tpu.matmul %22, %23, %cst_19 {dimension_numbers = #tpu.dot_dimension_numbers<[1], [1], [0], [0], [0, 0, 1, 0], [], []>} : vector<1x128xbf16>, vector<128x128xbf16>, vector<1x128xf32> -> vector<1x128xf32>
    %c0_20 = arith.constant 0 : index
    %25 = memref.load %arg9[%c0_20] : memref<1xf32, #tpu.memory_space<smem>>
    %26 = vector.broadcast %25 : f32 to vector<1x128xf32>
    %27 = arith.addf %24, %26 : vector<1x128xf32>
    %cst_21 = arith.constant 5.000000e-01 : f32
    %28 = vector.broadcast %cst_21 : f32 to vector<1x128xf32>
    %29 = arith.mulf %28, %27 : vector<1x128xf32>
    %30 = math.tanh %29 : vector<1x128xf32>
    %cst_22 = arith.constant 1.000000e+00 : f32
    %31 = vector.broadcast %cst_22 : f32 to vector<1x128xf32>
    %32 = arith.addf %30, %31 : vector<1x128xf32>
    %cst_23 = arith.constant 5.000000e-01 : f32
    %33 = vector.broadcast %cst_23 : f32 to vector<1x128xf32>
    %34 = arith.mulf %33, %32 : vector<1x128xf32>
    %c0_24 = arith.constant 0 : index
    %c0_25 = arith.constant 0 : index
    %35 = vector.load %arg10[%c0_24, %c0_25] : memref<1x128xf32, #tpu.memory_space<vmem>>, vector<1x128xf32>
    tpu.vector_store %arg10[%c0_24, %c0_25], %34 {strides = array<i32>} : memref<1x128xf32, #tpu.memory_space<vmem>>, vector<1x128xf32>,
    return
  }
  func.func @transform_0(%arg0: i32) -> (i32, i32) {
    %c0_i32 = arith.constant 0 : i32
    %c0_i32_0 = arith.constant 0 : i32
    return %arg0, %c0_i32 : i32, i32
  }
  func.func @transform_1(%arg0: i32) -> (i32, i32) {
    %c0_i32 = arith.constant 0 : i32
    %c0_i32_0 = arith.constant 0 : i32
    return %arg0, %c0_i32 : i32, i32
  }
  func.func @transform_2(%arg0: i32) -> (i32, i32) {
    %c0_i32 = arith.constant 0 : i32
    %c0_i32_0 = arith.constant 0 : i32
    %c0_i32_1 = arith.constant 0 : i32
    return %c0_i32, %c0_i32_0 : i32, i32
  }
  func.func @transform_3(%arg0: i32) -> (i32, i32) {
    %c0_i32 = arith.constant 0 : i32
    %c0_i32_0 = arith.constant 0 : i32
    %c0_i32_1 = arith.constant 0 : i32
    return %c0_i32, %c0_i32_0 : i32, i32
  }
  func.func @transform_4(%arg0: i32) -> (i32, i32) {
    %c0_i32 = arith.constant 0 : i32
    %c0_i32_0 = arith.constant 0 : i32
    %c0_i32_1 = arith.constant 0 : i32
    return %c0_i32, %c0_i32_0 : i32, i32
  }
  func.func @transform_5(%arg0: i32) -> (i32, i32) {
    %c0_i32 = arith.constant 0 : i32
    %c0_i32_0 = arith.constant 0 : i32
    %c0_i32_1 = arith.constant 0 : i32
    return %c0_i32, %c0_i32_0 : i32, i32
  }
  func.func @transform_6(%arg0: i32) -> (i32, i32) {
    %c0_i32 = arith.constant 0 : i32
    %c0_i32_0 = arith.constant 0 : i32
    %c0_i32_1 = arith.constant 0 : i32
    return %c0_i32, %c0_i32_0 : i32, i32
  }
  func.func @transform_7(%arg0: i32) -> (i32, i32) {
    %c0_i32 = arith.constant 0 : i32
    %c0_i32_0 = arith.constant 0 : i32
    %c0_i32_1 = arith.constant 0 : i32
    return %c0_i32, %c0_i32_0 : i32, i32
  }
  func.func @transform_8(%arg0: i32) -> i32 {
    %c0_i32 = arith.constant 0 : i32
    %c0_i32_0 = arith.constant 0 : i32
    return %c0_i32 : i32
  }
  func.func @transform_9(%arg0: i32) -> (i32, i32) {
    %c0_i32 = arith.constant 0 : i32
    %c0_i32_0 = arith.constant 0 : i32
    return %c0_i32, %arg0 : i32, i32
  }
}

</mosaic_0001>

<llo_original>
// kernel: tpu_custom_call.1
$region0: #{tpu_custom_call.1}
  #allocation0 [shape = 'u32[]', space=smem, size = 0x4, offset = 0x4, fixed_abs, tag = 'smem constant byte address 0x4 - core index']
  #allocation1 [shape = 'u32[144,128]{1,0:T(1,128)}', space=vmem, size = 0x12000, scoped, tag = 'internal scratch']
  #allocation2 [shape = 'f32[1]{0:T(128)S(6)}', space=smem, size = 0x200, scoped, tag = 'scoped memory for tpu_custom_call.1']
  %s0 = inlined_call_operand.hbm [shape: f32[256,128], index: 0, kind: input, shape index: {}]
  %s1 = inlined_call_operand.hbm [shape: f32[256,128], index: 1, kind: input, shape index: {}]
  %s2 = inlined_call_operand.hbm [shape: bf16[128,512], index: 2, kind: input, shape index: {}]
  %s3 = inlined_call_operand.hbm [shape: bf16[128,512], index: 3, kind: input, shape index: {}]
  %s4 = inlined_call_operand.vmem [shape: f32[1,512], index: 4, kind: input, shape index: {}]
  %s5 = inlined_call_operand.hbm [shape: bf16[512,128], index: 5, kind: input, shape index: {}]
  %s6 = inlined_call_operand.vmem [shape: f32[1,128], index: 6, kind: input, shape index: {}]
  %s7 = inlined_call_operand.vmem [shape: bf16[1,128], index: 7, kind: input, shape index: {}]
  %s8 = inlined_call_operand.<no memory space> [shape: f32[1], index: 8, kind: input, shape index: {}]
  %s9 = inlined_call_operand.hbm [shape: f32[1,256], index: 9, kind: output, shape index: {}]
  %s10 = sld [smem:[#allocation0]]
  $region89: #{tpu_custom_call.1} parent=0
    _
  %s12 = ssub.s32 1, %s10
  %s13 = scalar_select 0, %s12, %s10
  %14 = sst [smem:[#allocation2]] %s8
  $region1: #{tpu_custom_call.1} parent=0
    #allocation3 [shape = 'u8[131072]{0}', space=vmem, size = 0x20000, scoped, tag = 'input window, operand 0']
    #allocation4 [shape = 's32[2]{0}', space=sflag, size = 0x8, scoped, tag = 'scoped memory for tpu_custom_call.1']
    #allocation5 [shape = 's32[2]{0}', space=sflag, size = 0x8, scoped, tag = 'scoped memory for tpu_custom_call.1']
    #allocation6 [shape = 'u8[131072]{0}', space=vmem, size = 0x20000, scoped, tag = 'input window, operand 1']
    #allocation7 [shape = 's32[2]{0}', space=sflag, size = 0x8, scoped, tag = 'scoped memory for tpu_custom_call.1']
    #allocation8 [shape = 'u8[131072]{0}', space=vmem, size = 0x20000, scoped, tag = 'input window, operand 2, single buffered']
    #allocation9 [shape = 'u8[131072]{0}', space=vmem, size = 0x20000, scoped, tag = 'input window, operand 3, single buffered']
    #allocation10 [shape = 's32[1]{0}', space=sflag, size = 0x4, scoped, tag = 'scoped memory for tpu_custom_call.1']
    #allocation11 [shape = 'u8[131072]{0}', space=vmem, size = 0x20000, scoped, tag = 'input window, operand 5, single buffered']
    #allocation12 [shape = 'u8[1024]{0}', space=vmem, size = 0x400, scoped, tag = 'output window, operand 0']
    %15 = vsyncpa [#allocation4], 0
    %s16 = scalar_lea.sflag [#allocation4], 1
    %17 = vsyncpa %s16, 0
    %18 = vsyncpa [#allocation7], 0
    %s19 = scalar_lea.sflag [#allocation7], 1
    %20 = vsyncpa %s19, 0
    %21 = vsyncpa [#allocation10], 0
    %22 = vsyncpa [#allocation5], 0
    %s23 = scalar_lea.sflag [#allocation5], 1
    %24 = vsyncpa %s23, 0
    loop: start=0, step=1, limit=4
    $region2: #{tpu_custom_call.1} parent=1 // loop_pre_header
      _
    $region3: #{tpu_custom_call.1} parent=1 // loop_header
      %s26 = sphi 0, %s30
      %p27 = scmp.ge.s32.totalorder %s26, 4
      %s36 = sphi 0, %s38
      %s39 = sphi 0, %s36
      %s40 = sphi 0, %s39
      %s56 = sphi 0, %s40
      %s62 = sphi 0, %s64
      %s65 = sphi 0, %s62
      %s66 = sphi 0, %s65
      %s82 = sphi 0, %s66
      %s86 = sphi 0, %s86
      %s88 = sphi 0, %s86
      %s89 = sphi 0, %s88
      %s103 = sphi 0, %s89
      %s107 = sphi 0, %s107
      %s109 = sphi 0, %s107
      %s110 = sphi 0, %s109
      %s124 = sphi 0, %s110
      %s128 = sphi 0, %s128
      %s130 = sphi 0, %s128
      %s131 = sphi 0, %s130
      %s145 = sphi 0, %s131
      %s149 = sphi 0, %s149
      %s151 = sphi 0, %s149
      %s152 = sphi 0, %s151
      %s166 = sphi 0, %s152
      %s170 = sphi 0, %s170
      %s172 = sphi 0, %s170
      %s173 = sphi 0, %s172
      %s187 = sphi 0, %s173
      %s191 = sphi 0, %s191
      %s193 = sphi 0, %s191
      %s194 = sphi 0, %s193
      %s208 = sphi 0, %s194
      %s212 = sphi 0, %s212
      %s214 = sphi 0, %s212
      %s215 = sphi 0, %s214
      %s229 = sphi 0, %s215
      %s235 = sphi 0, %s237
      %s238 = sphi 0, %s235
      %s239 = sphi 0, %s238
      %s255 = sphi 0, %s239
    $region4: #{tpu_custom_call.1} parent=1 // loop_header_branch
      %29 = sbr.rel (%p27) target = $region8
    $region5: #{tpu_custom_call.1} parent=1 // loop_body
      %s31 = ssub.s32 %s26, 1
      %s32 = ssub.s32 %s26, 2
      %s33 = sadd.s32 %s26, 1
      %s34 = ssub.s32 %s26, %s33
      %p35 = scmp.eq.s32.totalorder %s34, 0
      %s37 = sadd.s32 %s36, 1
      %s38 = scalar_select %p35, %s36, %s37
      %p41 = pneg %p35
      %p42 = scmp.eq.s32.totalorder %s26, 1
      %p43 = por %p41, %p42
      %p44 = scmp.ne.s32.totalorder %s36, %s39
      %p45 = scmp.eq.s32.totalorder %s26, 0
      %p46 = por %p44, %p45
      %p47 = scmp.ne.s32.totalorder %s36, %s39
      %p48 = scmp.eq.s32.totalorder %s31, 1
      %p49 = por %p47, %p48
      %p50 = scmp.ne.s32.totalorder %s39, %s40
      %p51 = scmp.eq.s32.totalorder %s31, 0
      %p52 = por %p50, %p51
      %p53 = scmp.ne.s32.totalorder %s39, %s40
      %p54 = scmp.eq.s32.totalorder %s32, 1
      %p55 = por %p53, %p54
      %p57 = scmp.ne.s32.totalorder %s40, %s56
      %p58 = scmp.eq.s32.totalorder %s32, 0
      %p59 = por %p57, %p58
      %s60 = ssub.s32 %s26, %s33
      %p61 = scmp.eq.s32.totalorder %s60, 0
      %s63 = sadd.s32 %s62, 1
      %s64 = scalar_select %p61, %s62, %s63
      %p67 = pneg %p61
      %p68 = scmp.eq.s32.totalorder %s26, 1
      %p69 = por %p67, %p68
      %p70 = scmp.ne.s32.totalorder %s62, %s65
      %p71 = scmp.eq.s32.totalorder %s26, 0
      %p72 = por %p70, %p71
      %p73 = scmp.ne.s32.totalorder %s62, %s65
      %p74 = scmp.eq.s32.totalorder %s31, 1
      %p75 = por %p73, %p74
      %p76 = scmp.ne.s32.totalorder %s65, %s66
      %p77 = scmp.eq.s32.totalorder %s31, 0
      %p78 = por %p76, %p77
      %p79 = scmp.ne.s32.totalorder %s65, %s66
      %p80 = scmp.eq.s32.totalorder %s32, 1
      %p81 = por %p79, %p80
      %p83 = scmp.ne.s32.totalorder %s66, %s82
      %p84 = scmp.eq.s32.totalorder %s32, 0
      %p85 = por %p83, %p84
      %s87 = sadd.s32 %s86, 1
      %p90 = scmp.eq.s32.totalorder %s26, 1
      %p91 = scmp.ne.s32.totalorder %s86, %s88
      %p92 = scmp.eq.s32.totalorder %s26, 0
      %p93 = por %p91, %p92
      %p94 = scmp.ne.s32.totalorder %s86, %s88
      %p95 = scmp.eq.s32.totalorder %s31, 1
      %p96 = por %p94, %p95
      %p97 = scmp.ne.s32.totalorder %s88, %s89
      %p98 = scmp.eq.s32.totalorder %s31, 0
      %p99 = por %p97, %p98
      %p100 = scmp.ne.s32.totalorder %s88, %s89
      %p101 = scmp.eq.s32.totalorder %s32, 1
      %p102 = por %p100, %p101
      %p104 = scmp.ne.s32.totalorder %s89, %s103
      %p105 = scmp.eq.s32.totalorder %s32, 0
      %p106 = por %p104, %p105
      %s108 = sadd.s32 %s107, 1
      %p111 = scmp.eq.s32.totalorder %s26, 1
      %p112 = scmp.ne.s32.totalorder %s107, %s109
      %p113 = scmp.eq.s32.totalorder %s26, 0
      %p114 = por %p112, %p113
      %p115 = scmp.ne.s32.totalorder %s107, %s109
      %p116 = scmp.eq.s32.totalorder %s31, 1
      %p117 = por %p115, %p116
      %p118 = scmp.ne.s32.totalorder %s109, %s110
      %p119 = scmp.eq.s32.totalorder %s31, 0
      %p120 = por %p118, %p119
      %p121 = scmp.ne.s32.totalorder %s109, %s110
      %p122 = scmp.eq.s32.totalorder %s32, 1
      %p123 = por %p121, %p122
      %p125 = scmp.ne.s32.totalorder %s110, %s124
      %p126 = scmp.eq.s32.totalorder %s32, 0
      %p127 = por %p125, %p126
      %s129 = sadd.s32 %s128, 1
      %p132 = scmp.eq.s32.totalorder %s26, 1
      %p133 = scmp.ne.s32.totalorder %s128, %s130
      %p134 = scmp.eq.s32.totalorder %s26, 0
      %p135 = por %p133, %p134
      %p136 = scmp.ne.s32.totalorder %s128, %s130
      %p137 = scmp.eq.s32.totalorder %s31, 1
      %p138 = por %p136, %p137
      %p139 = scmp.ne.s32.totalorder %s130, %s131
      %p140 = scmp.eq.s32.totalorder %s31, 0
      %p141 = por %p139, %p140
      %p142 = scmp.ne.s32.totalorder %s130, %s131
      %p143 = scmp.eq.s32.totalorder %s32, 1
      %p144 = por %p142, %p143
      %p146 = scmp.ne.s32.totalorder %s131, %s145
      %p147 = scmp.eq.s32.totalorder %s32, 0
      %p148 = por %p146, %p147
      %s150 = sadd.s32 %s149, 1
      %p153 = scmp.eq.s32.totalorder %s26, 1
      %p154 = scmp.ne.s32.totalorder %s149, %s151
      %p155 = scmp.eq.s32.totalorder %s26, 0
      %p156 = por %p154, %p155
      %p157 = scmp.ne.s32.totalorder %s149, %s151
      %p158 = scmp.eq.s32.totalorder %s31, 1
      %p159 = por %p157, %p158
      %p160 = scmp.ne.s32.totalorder %s151, %s152
      %p161 = scmp.eq.s32.totalorder %s31, 0
      %p162 = por %p160, %p161
      %p163 = scmp.ne.s32.totalorder %s151, %s152
      %p164 = scmp.eq.s32.totalorder %s32, 1
      %p165 = por %p163, %p164
      %p167 = scmp.ne.s32.totalorder %s152, %s166
      %p168 = scmp.eq.s32.totalorder %s32, 0
      %p169 = por %p167, %p168
      %s171 = sadd.s32 %s170, 1
      %p174 = scmp.eq.s32.totalorder %s26, 1
      %p175 = scmp.ne.s32.totalorder %s170, %s172
      %p176 = scmp.eq.s32.totalorder %s26, 0
      %p177 = por %p175, %p176
      %p178 = scmp.ne.s32.totalorder %s170, %s172
      %p179 = scmp.eq.s32.totalorder %s31, 1
      %p180 = por %p178, %p179
      %p181 = scmp.ne.s32.totalorder %s172, %s173
      %p182 = scmp.eq.s32.totalorder %s31, 0
      %p183 = por %p181, %p182
      %p184 = scmp.ne.s32.totalorder %s172, %s173
      %p185 = scmp.eq.s32.totalorder %s32, 1
      %p186 = por %p184, %p185
      %p188 = scmp.ne.s32.totalorder %s173, %s187
      %p189 = scmp.eq.s32.totalorder %s32, 0
      %p190 = por %p188, %p189
      %s192 = sadd.s32 %s191, 1
      %p195 = scmp.eq.s32.totalorder %s26, 1
      %p196 = scmp.ne.s32.totalorder %s191, %s193
      %p197 = scmp.eq.s32.totalorder %s26, 0
      %p198 = por %p196, %p197
      %p199 = scmp.ne.s32.totalorder %s191, %s193
      %p200 = scmp.eq.s32.totalorder %s31, 1
      %p201 = por %p199, %p200
      %p202 = scmp.ne.s32.totalorder %s193, %s194
      %p203 = scmp.eq.s32.totalorder %s31, 0
      %p204 = por %p202, %p203
      %p205 = scmp.ne.s32.totalorder %s193, %s194
      %p206 = scmp.eq.s32.totalorder %s32, 1
      %p207 = por %p205, %p206
      %p209 = scmp.ne.s32.totalorder %s194, %s208
      %p210 = scmp.eq.s32.totalorder %s32, 0
      %p211 = por %p209, %p210
      %s213 = sadd.s32 %s212, 1
      %p216 = scmp.eq.s32.totalorder %s26, 1
      %p217 = scmp.ne.s32.totalorder %s212, %s214
      %p218 = scmp.eq.s32.totalorder %s26, 0
      %p219 = por %p217, %p218
      %p220 = scmp.ne.s32.totalorder %s212, %s214
      %p221 = scmp.eq.s32.totalorder %s31, 1
      %p222 = por %p220, %p221
      %p223 = scmp.ne.s32.totalorder %s214, %s215
      %p224 = scmp.eq.s32.totalorder %s31, 0
      %p225 = por %p223, %p224
      %p226 = scmp.ne.s32.totalorder %s214, %s215
      %p227 = scmp.eq.s32.totalorder %s32, 1
      %p228 = por %p226, %p227
      %p230 = scmp.ne.s32.totalorder %s215, %s229
      %p231 = scmp.eq.s32.totalorder %s32, 0
      %p232 = por %p230, %p231
      %s233 = ssub.s32 %s26, %s33
      %p234 = scmp.eq.s32.totalorder %s233, 0
      %s236 = sadd.s32 %s235, 1
      %s237 = scalar_select %p234, %s235, %s236
      %p240 = pneg %p234
      %p241 = scmp.eq.s32.totalorder %s26, 1
      %p242 = por %p240, %p241
      %p243 = scmp.ne.s32.totalorder %s235, %s238
      %p244 = scmp.eq.s32.totalorder %s26, 0
      %p245 = por %p243, %p244
      %p246 = scmp.ne.s32.totalorder %s235, %s238
      %p247 = scmp.eq.s32.totalorder %s31, 1
      %p248 = por %p246, %p247
      %p249 = scmp.ne.s32.totalorder %s238, %s239
      %p250 = scmp.eq.s32.totalorder %s31, 0
      %p251 = por %p249, %p250
      %p252 = scmp.ne.s32.totalorder %s238, %s239
      %p253 = scmp.eq.s32.totalorder %s32, 1
      %p254 = por %p252, %p253
      %p256 = scmp.ne.s32.totalorder %s239, %s255
      %p257 = scmp.eq.s32.totalorder %s32, 0
      %p258 = por %p256, %p257
      %p259 = scmp.le.s32.totalorder 1, %s26
      %p260 = scmp.lt.s32.totalorder %s26, 3
      %p261 = pnand %p259, %p260
      %p262 = pneg %p261
      // Predicated region
      $region9: #{tpu_custom_call.1} parent=5 // pred_check
        _
      $region10: #{tpu_custom_call.1} parent=5 // pred_check_branch
        %264 = sbr.rel (%p261) target = $region12
      $region11: #{tpu_custom_call.1} parent=5 // pred_region
        %s265 = ssub.s32 %s26, 1
        // Predicated region
        $region13: #{tpu_custom_call.1} parent=11 // pred_check
          %p266 = pneg %p99
        $region14: #{tpu_custom_call.1} parent=11 // pred_check_branch
          %268 = sbr.rel (%p266) target = $region16
        $region15: #{tpu_custom_call.1} parent=11 // pred_region
          %s270 = ssub.s32 4096, 4096
          %271 = vsyncadd [#allocation7], %s270
          %s272 = sshll.u32 [#allocation8], 4
          %s273 = int_to_ptr.vmem [resolvable:$true] %s272
          %278 = dma.hbm_to_vmem [thread:$0]  %s2, 4096, %s273, [#allocation7], 256, 256, 16
        $region16: #{tpu_custom_call.1} parent=11 // pred_fallthru
          _
        // Predicated region
        $region17: #{tpu_custom_call.1} parent=11 // pred_check
          %p279 = pneg %p120
        $region18: #{tpu_custom_call.1} parent=11 // pred_check_branch
          %281 = sbr.rel (%p279) target = $region20
        $region19: #{tpu_custom_call.1} parent=11 // pred_region
          %s283 = ssub.s32 4096, 4096
          %284 = vsyncadd [#allocation10], %s283
          %s285 = sshll.u32 [#allocation9], 4
          %s286 = int_to_ptr.vmem [resolvable:$true] %s285
          %291 = dma.hbm_to_vmem [thread:$0]  %s3, 4096, %s286, [#allocation10], 256, 256, 16
        $region20: #{tpu_custom_call.1} parent=11 // pred_fallthru
          _
        // Predicated region
        $region21: #{tpu_custom_call.1} parent=11 // pred_check
          %p292 = pneg %p141
        $region22: #{tpu_custom_call.1} parent=11 // pred_check_branch
          %294 = sbr.rel (%p292) target = $region24
        $region23: #{tpu_custom_call.1} parent=11 // pred_region
          _
        $region24: #{tpu_custom_call.1} parent=11 // pred_fallthru
          _
        // Predicated region
        $region25: #{tpu_custom_call.1} parent=11 // pred_check
          %p295 = pneg %p162
        $region26: #{tpu_custom_call.1} parent=11 // pred_check_branch
          %297 = sbr.rel (%p295) target = $region28
        $region27: #{tpu_custom_call.1} parent=11 // pred_region
          %s299 = ssub.s32 4096, 4096
          %300 = vsyncadd [#allocation10], %s299
          %s301 = sshll.u32 [#allocation11], 4
          %s302 = int_to_ptr.vmem [resolvable:$true] %s301
          %307 = dma.hbm_to_vmem [thread:$0]  %s5, 4096, %s302, [#allocation10], 64, 64, 4
        $region28: #{tpu_custom_call.1} parent=11 // pred_fallthru
          _
        // Predicated region
        $region29: #{tpu_custom_call.1} parent=11 // pred_check
          %p308 = pneg %p183
        $region30: #{tpu_custom_call.1} parent=11 // pred_check_branch
          %310 = sbr.rel (%p308) target = $region32
        $region31: #{tpu_custom_call.1} parent=11 // pred_region
          _
        $region32: #{tpu_custom_call.1} parent=11 // pred_fallthru
          _
        // Predicated region
        $region33: #{tpu_custom_call.1} parent=11 // pred_check
          %p311 = pneg %p204
        $region34: #{tpu_custom_call.1} parent=11 // pred_check_branch
          %313 = sbr.rel (%p311) target = $region36
        $region35: #{tpu_custom_call.1} parent=11 // pred_region
          _
        $region36: #{tpu_custom_call.1} parent=11 // pred_fallthru
          _
        // Predicated region
        $region37: #{tpu_custom_call.1} parent=11 // pred_check
          %p314 = pneg %p225
        $region38: #{tpu_custom_call.1} parent=11 // pred_check_branch
          %316 = sbr.rel (%p314) target = $region40
        $region39: #{tpu_custom_call.1} parent=11 // pred_region
          _
        $region40: #{tpu_custom_call.1} parent=11 // pred_fallthru
          _
      $region12: #{tpu_custom_call.1} parent=5 // pred_fallthru
        _
      %p317 = scmp.lt.s32.totalorder %s26, 2
      // Predicated region
      $region41: #{tpu_custom_call.1} parent=5 // pred_check
        %p318 = pneg %p317
      $region42: #{tpu_custom_call.1} parent=5 // pred_check_branch
        %320 = sbr.rel (%p318) target = $region44
      $region43: #{tpu_custom_call.1} parent=5 // pred_region
        // Predicated region
        $region45: #{tpu_custom_call.1} parent=43 // pred_check
          %p321 = pneg %p46
        $region46: #{tpu_custom_call.1} parent=43 // pred_check_branch
          %323 = sbr.rel (%p321) target = $region48
        $region47: #{tpu_custom_call.1} parent=43 // pred_region
          %s324 = sand.u32 %s36, 1
          %s325 = scalar_lea.sflag [#allocation4], %s324
          %s326 = sand.u32 %s36, 1
          %s327 = smul.addr %s326, 128
          %s328 = scalar_lea.vmem [#allocation3], %s327
          %s329 = smul.u32 16, %s26
          %s331 = ssub.s32 2048, 2048
          %332 = vsyncadd %s325, %s331
          %s333 = smul.addr %s329, 128
          %s334 = scalar_lea.hbm %s0, %s333
          %s335 = sshll.u32 %s328, 4
          %s336 = int_to_ptr.vmem [resolvable:$true] %s335
          %341 = dma.hbm_to_vmem [thread:$0]  %s334, 2048, %s336, %s325, 128, 128, 8
        $region48: #{tpu_custom_call.1} parent=43 // pred_fallthru
          _
        // Predicated region
        $region49: #{tpu_custom_call.1} parent=43 // pred_check
          %p342 = pneg %p72
        $region50: #{tpu_custom_call.1} parent=43 // pred_check_branch
          %344 = sbr.rel (%p342) target = $region52
        $region51: #{tpu_custom_call.1} parent=43 // pred_region
          %s345 = sand.u32 %s26, 1
          %s346 = scalar_lea.sflag [#allocation7], %s345
          %s347 = sand.u32 %s62, 1
          %s348 = smul.addr %s347, 128
          %s349 = scalar_lea.vmem [#allocation6], %s348
          %s350 = smul.u32 16, %s26
          %s352 = ssub.s32 2048, 2048
          %353 = vsyncadd %s346, %s352
          %s354 = smul.addr %s350, 128
          %s355 = scalar_lea.hbm %s1, %s354
          %s356 = sshll.u32 %s349, 4
          %s357 = int_to_ptr.vmem [resolvable:$true] %s356
          %362 = dma.hbm_to_vmem [thread:$0]  %s355, 2048, %s357, %s346, 128, 128, 8
        $region52: #{tpu_custom_call.1} parent=43 // pred_fallthru
          _
      $region44: #{tpu_custom_call.1} parent=5 // pred_fallthru
        _
      %p363 = scmp.le.s32.totalorder 1, %s26
      %p364 = scmp.lt.s32.totalorder %s26, 3
      %p365 = pnand %p363, %p364
      %p366 = pneg %p365
      // Predicated region
      $region53: #{tpu_custom_call.1} parent=5 // pred_check
        _
      $region54: #{tpu_custom_call.1} parent=5 // pred_check_branch
        %368 = sbr.rel (%p365) target = $region56
      $region55: #{tpu_custom_call.1} parent=5 // pred_region
        %s369 = ssub.s32 %s26, 1
        %s370 = sand.u32 %s39, 1
        %s371 = scalar_lea.sflag [#allocation4], %s370
        %s372 = sand.u32 %s39, 1
        %s373 = smul.addr %s372, 128
        %s374 = scalar_lea.vmem [#allocation3], %s373
        // Predicated region
        $region57: #{tpu_custom_call.1} parent=55 // pred_check
          %p375 = pneg %p52
        $region58: #{tpu_custom_call.1} parent=55 // pred_check_branch
          %377 = sbr.rel (%p375) target = $region60
        $region59: #{tpu_custom_call.1} parent=55 // pred_region
          %378 = dma.done %s371, 2048
        $region60: #{tpu_custom_call.1} parent=55 // pred_fallthru
          _
        %s379 = sand.u32 %s31, 1
        %s380 = scalar_lea.sflag [#allocation7], %s379
        %s381 = sand.u32 %s65, 1
        %s382 = smul.addr %s381, 128
        %s383 = scalar_lea.vmem [#allocation6], %s382
        // Predicated region
        $region61: #{tpu_custom_call.1} parent=55 // pred_check
          %p384 = pneg %p78
        $region62: #{tpu_custom_call.1} parent=55 // pred_check_branch
          %386 = sbr.rel (%p384) target = $region64
        $region63: #{tpu_custom_call.1} parent=55 // pred_region
          %387 = dma.done %s380, 2048
        $region64: #{tpu_custom_call.1} parent=55 // pred_fallthru
          _
        // Predicated region
        $region65: #{tpu_custom_call.1} parent=55 // pred_check
          %p388 = pneg %p99
        $region66: #{tpu_custom_call.1} parent=55 // pred_check_branch
          %390 = sbr.rel (%p388) target = $region68
        $region67: #{tpu_custom_call.1} parent=55 // pred_region
          %391 = dma.done [#allocation7], 4096
        $region68: #{tpu_custom_call.1} parent=55 // pred_fallthru
          _
        // Predicated region
        $region69: #{tpu_custom_call.1} parent=55 // pred_check
          %p392 = pneg %p120
        $region70: #{tpu_custom_call.1} parent=55 // pred_check_branch
          %394 = sbr.rel (%p392) target = $region72
        $region71: #{tpu_custom_call.1} parent=55 // pred_region
          %395 = dma.done [#allocation10], 4096
        $region72: #{tpu_custom_call.1} parent=55 // pred_fallthru
          _
        // Predicated region
        $region73: #{tpu_custom_call.1} parent=55 // pred_check
          %p396 = pneg %p162
        $region74: #{tpu_custom_call.1} parent=55 // pred_check_branch
          %398 = sbr.rel (%p396) target = $region76
        $region75: #{tpu_custom_call.1} parent=55 // pred_region
          %399 = dma.done [#allocation10], 4096
        $region76: #{tpu_custom_call.1} parent=55 // pred_fallthru
          _
        %s400 = sand.u32 %s39, 1
        %s401 = scalar_lea.sflag [#allocation4], %s400
        %s402 = sand.u32 %s39, 1
        %s403 = smul.addr %s402, 128
        %s404 = scalar_lea.vmem [#allocation3], %s403
        %p405 = pneg %p52
        %p406 = pneg %p49
        %s407 = sand.u32 %s31, 1
        %s408 = scalar_lea.sflag [#allocation7], %s407
        %s409 = sand.u32 %s65, 1
        %s410 = smul.addr %s409, 128
        %s411 = scalar_lea.vmem [#allocation6], %s410
        %p412 = pneg %p78
        %p413 = pneg %p75
        %p414 = pneg %p99
        %p415 = pneg %p96
        %p416 = pneg %p120
        %p417 = pneg %p117
        %p418 = pneg %p141
        %p419 = pneg %p138
        %p420 = pneg %p162
        %p421 = pneg %p159
        %p422 = pneg %p183
        %p423 = pneg %p180
        %p424 = pneg %p204
        %p425 = pneg %p201
        %p426 = pneg %p225
        %p427 = pneg %p222
        %p428 = pneg %p251
        %p429 = pneg %p248
        %s430 = sand.u32 %s238, 1
        %s431 = scalar_lea.sflag [#allocation5], %s430
        %s432 = sand.u32 %s238, 1
        %s433 = scalar_lea.vmem [#allocation12], %s432
        %s434 = smul.u32 16, %s31
        %s435 = smul.u32 16, %s31
        %v437 = vld [vmem:[%s374] sm:$0xff]
        %v438 = vld [vmem:[%s374 + $0x8] sm:$0xff]
        %v439 = vld [vmem:[%s374 + $0x10] sm:$0xff]
        %v440 = vld [vmem:[%s374 + $0x18] sm:$0xff]
        %v441 = vld [vmem:[%s374 + $0x20] sm:$0xff]
        %v442 = vld [vmem:[%s374 + $0x28] sm:$0xff]
        %v443 = vld [vmem:[%s374 + $0x30] sm:$0xff]
        %v444 = vld [vmem:[%s374 + $0x38] sm:$0xff]
        %v445 = vld [vmem:[%s374 + $0x40] sm:$0xff]
        %v446 = vld [vmem:[%s374 + $0x48] sm:$0xff]
        %v447 = vld [vmem:[%s374 + $0x50] sm:$0xff]
        %v448 = vld [vmem:[%s374 + $0x58] sm:$0xff]
        %v449 = vld [vmem:[%s374 + $0x60] sm:$0xff]
        %v450 = vld [vmem:[%s374 + $0x68] sm:$0xff]
        %v451 = vld [vmem:[%s374 + $0x70] sm:$0xff]
        %v452 = vld [vmem:[%s374 + $0x78] sm:$0xff]
        %v453 = vld [vmem:[%s383] sm:$0xff]
        %v454 = vld [vmem:[%s383 + $0x8] sm:$0xff]
        %v455 = vld [vmem:[%s383 + $0x10] sm:$0xff]
        %v456 = vld [vmem:[%s383 + $0x18] sm:$0xff]
        %v457 = vld [vmem:[%s383 + $0x20] sm:$0xff]
        %v458 = vld [vmem:[%s383 + $0x28] sm:$0xff]
        %v459 = vld [vmem:[%s383 + $0x30] sm:$0xff]
        %v460 = vld [vmem:[%s383 + $0x38] sm:$0xff]
        %v461 = vld [vmem:[%s383 + $0x40] sm:$0xff]
        %v462 = vld [vmem:[%s383 + $0x48] sm:$0xff]
        %v463 = vld [vmem:[%s383 + $0x50] sm:$0xff]
        %v464 = vld [vmem:[%s383 + $0x58] sm:$0xff]
        %v465 = vld [vmem:[%s383 + $0x60] sm:$0xff]
        %v466 = vld [vmem:[%s383 + $0x68] sm:$0xff]
        %v467 = vld [vmem:[%s383 + $0x70] sm:$0xff]
        %v468 = vld [vmem:[%s383 + $0x78] sm:$0xff]
        %v469 = vpack.c.bf16 %v438, %v437
        %v470 = vpack.c.bf16 %v440, %v439
        %v471 = vpack.c.bf16 %v442, %v441
        %v472 = vpack.c.bf16 %v444, %v443
        %v473 = vpack.c.bf16 %v446, %v445
        %v474 = vpack.c.bf16 %v448, %v447
        %v475 = vpack.c.bf16 %v450, %v449
        %v476 = vpack.c.bf16 %v452, %v451
        %v477 = vpack.c.bf16 %v454, %v453
        %v478 = vpack.c.bf16 %v456, %v455
        %v479 = vpack.c.bf16 %v458, %v457
        %v480 = vpack.c.bf16 %v460, %v459
        %v481 = vpack.c.bf16 %v462, %v461
        %v482 = vpack.c.bf16 %v464, %v463
        %v483 = vpack.c.bf16 %v466, %v465
        %v484 = vpack.c.bf16 %v468, %v467
        %v485 = vld [vmem:[#allocation8] sm:$0xff]
        %v486 = vld [vmem:[#allocation8 + $0x8] sm:$0xff]
        %v487 = vld [vmem:[#allocation8 + $0x10] sm:$0xff]
        %v488 = vld [vmem:[#allocation8 + $0x18] sm:$0xff]
        %v489 = vld [vmem:[#allocation8 + $0x20] sm:$0xff]
        %v490 = vld [vmem:[#allocation8 + $0x28] sm:$0xff]
        %v491 = vld [vmem:[#allocation8 + $0x30] sm:$0xff]
        %v492 = vld [vmem:[#allocation8 + $0x38] sm:$0xff]
        %v493 = vld [vmem:[#allocation8 + $0x40] sm:$0xff]
        %v494 = vld [vmem:[#allocation8 + $0x48] sm:$0xff]
        %v495 = vld [vmem:[#allocation8 + $0x50] sm:$0xff]
        %v496 = vld [vmem:[#allocation8 + $0x58] sm:$0xff]
        %v497 = vld [vmem:[#allocation8 + $0x60] sm:$0xff]
        %v498 = vld [vmem:[#allocation8 + $0x68] sm:$0xff]
        %v499 = vld [vmem:[#allocation8 + $0x70] sm:$0xff]
        %v500 = vld [vmem:[#allocation8 + $0x78] sm:$0xff]
        %v501 = vld [vmem:[#allocation8 + $0x80] sm:$0xff]
        %v502 = vld [vmem:[#allocation8 + $0x88] sm:$0xff]
        %v503 = vld [vmem:[#allocation8 + $0x90] sm:$0xff]
        %v504 = vld [vmem:[#allocation8 + $0x98] sm:$0xff]
        %v505 = vld [vmem:[#allocation8 + $0xa0] sm:$0xff]
        %v506 = vld [vmem:[#allocation8 + $0xa8] sm:$0xff]
        %v507 = vld [vmem:[#allocation8 + $0xb0] sm:$0xff]
        %v508 = vld [vmem:[#allocation8 + $0xb8] sm:$0xff]
        %v509 = vld [vmem:[#allocation8 + $0xc0] sm:$0xff]
        %v510 = vld [vmem:[#allocation8 + $0xc8] sm:$0xff]
        %v511 = vld [vmem:[#allocation8 + $0xd0] sm:$0xff]
        %v512 = vld [vmem:[#allocation8 + $0xd8] sm:$0xff]
        %v513 = vld [vmem:[#allocation8 + $0xe0] sm:$0xff]
        %v514 = vld [vmem:[#allocation8 + $0xe8] sm:$0xff]
        %v515 = vld [vmem:[#allocation8 + $0xf0] sm:$0xff]
        %v516 = vld [vmem:[#allocation8 + $0xf8] sm:$0xff]
        %v517 = vld [vmem:[#allocation9] sm:$0xff]
        %v518 = vld [vmem:[#allocation9 + $0x8] sm:$0xff]
        %v519 = vld [vmem:[#allocation9 + $0x10] sm:$0xff]
        %v520 = vld [vmem:[#allocation9 + $0x18] sm:$0xff]
        %v521 = vld [vmem:[#allocation9 + $0x20] sm:$0xff]
        %v522 = vld [vmem:[#allocation9 + $0x28] sm:$0xff]
        %v523 = vld [vmem:[#allocation9 + $0x30] sm:$0xff]
        %v524 = vld [vmem:[#allocation9 + $0x38] sm:$0xff]
        %v525 = vld [vmem:[#allocation9 + $0x40] sm:$0xff]
        %v526 = vld [vmem:[#allocation9 + $0x48] sm:$0xff]
        %v527 = vld [vmem:[#allocation9 + $0x50] sm:$0xff]
        %v528 = vld [vmem:[#allocation9 + $0x58] sm:$0xff]
        %v529 = vld [vmem:[#allocation9 + $0x60] sm:$0xff]
        %v530 = vld [vmem:[#allocation9 + $0x68] sm:$0xff]
        %v531 = vld [vmem:[#allocation9 + $0x70] sm:$0xff]
        %v532 = vld [vmem:[#allocation9 + $0x78] sm:$0xff]
        %v533 = vld [vmem:[#allocation9 + $0x80] sm:$0xff]
        %v534 = vld [vmem:[#allocation9 + $0x88] sm:$0xff]
        %v535 = vld [vmem:[#allocation9 + $0x90] sm:$0xff]
        %v536 = vld [vmem:[#allocation9 + $0x98] sm:$0xff]
        %v537 = vld [vmem:[#allocation9 + $0xa0] sm:$0xff]
        %v538 = vld [vmem:[#allocation9 + $0xa8] sm:$0xff]
        %v539 = vld [vmem:[#allocation9 + $0xb0] sm:$0xff]
        %v540 = vld [vmem:[#allocation9 + $0xb8] sm:$0xff]
        %v541 = vld [vmem:[#allocation9 + $0xc0] sm:$0xff]
        %v542 = vld [vmem:[#allocation9 + $0xc8] sm:$0xff]
        %v543 = vld [vmem:[#allocation9 + $0xd0] sm:$0xff]
        %v544 = vld [vmem:[#allocation9 + $0xd8] sm:$0xff]
        %v545 = vld [vmem:[#allocation9 + $0xe0] sm:$0xff]
        %v546 = vld [vmem:[#allocation9 + $0xe8] sm:$0xff]
        %v547 = vld [vmem:[#allocation9 + $0xf0] sm:$0xff]
        %v548 = vld [vmem:[#allocation9 + $0xf8] sm:$0xff]
        %v581 = vunpack.c.l.b16 %v517
        %v582 = vunpack.c.h.b16 %v517
        %v583 = vunpack.c.l.b16 %v518
        %v584 = vunpack.c.h.b16 %v518
        %v585 = vunpack.c.l.b16 %v519
        %v586 = vunpack.c.h.b16 %v519
        %v587 = vunpack.c.l.b16 %v520
        %v588 = vunpack.c.h.b16 %v520
        %v589 = vunpack.c.l.b16 %v521
        %v590 = vunpack.c.h.b16 %v521
        %v591 = vunpack.c.l.b16 %v522
        %v592 = vunpack.c.h.b16 %v522
        %v593 = vunpack.c.l.b16 %v523
        %v594 = vunpack.c.h.b16 %v523
        %v595 = vunpack.c.l.b16 %v524
        %v596 = vunpack.c.h.b16 %v524
        %v597 = vunpack.c.l.b16 %v525
        %v598 = vunpack.c.h.b16 %v525
        %v599 = vunpack.c.l.b16 %v526
        %v600 = vunpack.c.h.b16 %v526
        %v601 = vunpack.c.l.b16 %v527
        %v602 = vunpack.c.h.b16 %v527
        %v603 = vunpack.c.l.b16 %v528
        %v604 = vunpack.c.h.b16 %v528
        %v605 = vunpack.c.l.b16 %v529
        %v606 = vunpack.c.h.b16 %v529
        %v607 = vunpack.c.l.b16 %v530
        %v608 = vunpack.c.h.b16 %v530
        %v609 = vunpack.c.l.b16 %v531
        %v610 = vunpack.c.h.b16 %v531
        %v611 = vunpack.c.l.b16 %v532
        %v612 = vunpack.c.h.b16 %v532
        %v613 = vunpack.c.l.b16 %v533
        %v614 = vunpack.c.h.b16 %v533
        %v615 = vunpack.c.l.b16 %v534
        %v616 = vunpack.c.h.b16 %v534
        %v617 = vunpack.c.l.b16 %v535
        %v618 = vunpack.c.h.b16 %v535
        %v619 = vunpack.c.l.b16 %v536
        %v620 = vunpack.c.h.b16 %v536
        %v621 = vunpack.c.l.b16 %v537
        %v622 = vunpack.c.h.b16 %v537
        %v623 = vunpack.c.l.b16 %v538
        %v624 = vunpack.c.h.b16 %v538
        %v625 = vunpack.c.l.b16 %v539
        %v626 = vunpack.c.h.b16 %v539
        %v627 = vunpack.c.l.b16 %v540
        %v628 = vunpack.c.h.b16 %v540
        %v629 = vunpack.c.l.b16 %v541
        %v630 = vunpack.c.h.b16 %v541
        %v631 = vunpack.c.l.b16 %v542
        %v632 = vunpack.c.h.b16 %v542
        %v633 = vunpack.c.l.b16 %v543
        %v634 = vunpack.c.h.b16 %v543
        %v635 = vunpack.c.l.b16 %v544
        %v636 = vunpack.c.h.b16 %v544
        %v637 = vunpack.c.l.b16 %v545
        %v638 = vunpack.c.h.b16 %v545
        %v639 = vunpack.c.l.b16 %v546
        %v640 = vunpack.c.h.b16 %v546
        %v641 = vunpack.c.l.b16 %v547
        %v642 = vunpack.c.h.b16 %v547
        %v643 = vunpack.c.l.b16 %v548
        %v644 = vunpack.c.h.b16 %v548
        %v645 = vpack.c.b16 %v585, %v581
        %v646 = vpack.c.b16 %v586, %v582
        %v647 = vpack.c.b16 %v587, %v583
        %v648 = vpack.c.b16 %v588, %v584
        %v649 = vpack.c.b16 %v593, %v589
        %v650 = vpack.c.b16 %v594, %v590
        %v651 = vpack.c.b16 %v595, %v591
        %v652 = vpack.c.b16 %v596, %v592
        %v653 = vpack.c.b16 %v601, %v597
        %v654 = vpack.c.b16 %v602, %v598
        %v655 = vpack.c.b16 %v603, %v599
        %v656 = vpack.c.b16 %v604, %v600
        %v657 = vpack.c.b16 %v609, %v605
        %v658 = vpack.c.b16 %v610, %v606
        %v659 = vpack.c.b16 %v611, %v607
        %v660 = vpack.c.b16 %v612, %v608
        %v661 = vpack.c.b16 %v617, %v613
        %v662 = vpack.c.b16 %v618, %v614
        %v663 = vpack.c.b16 %v619, %v615
        %v664 = vpack.c.b16 %v620, %v616
        %v665 = vpack.c.b16 %v625, %v621
        %v666 = vpack.c.b16 %v626, %v622
        %v667 = vpack.c.b16 %v627, %v623
        %v668 = vpack.c.b16 %v628, %v624
        %v669 = vpack.c.b16 %v633, %v629
        %v670 = vpack.c.b16 %v634, %v630
        %v671 = vpack.c.b16 %v635, %v631
        %v672 = vpack.c.b16 %v636, %v632
        %v673 = vpack.c.b16 %v641, %v637
        %v674 = vpack.c.b16 %v642, %v638
        %v675 = vpack.c.b16 %v643, %v639
        %v676 = vpack.c.b16 %v644, %v640
        %709 = vmatprep.subr.bf16.mxu0 %v674
        %710 = vmatpush1.bf16.msra.mxu0 %v673
        %711 = vmatprep.subr.bf16.mxu0 %v670
        %712 = vmatpush1.bf16.msra.mxu0 %v669
        %713 = vmatprep.subr.bf16.mxu0 %v666
        %714 = vmatpush1.bf16.msra.mxu0 %v665
        %715 = vmatprep.subr.bf16.mxu0 %v662
        %716 = vmatpush1.bf16.msra.mxu0 %v661
        %717 = vmatprep.subr.bf16.mxu0 %v658
        %718 = vmatpush1.bf16.msra.mxu0 %v657
        %719 = vmatprep.subr.bf16.mxu0 %v654
        %720 = vmatpush1.bf16.msra.mxu0 %v653
        %721 = vmatprep.subr.bf16.mxu0 %v650
        %722 = vmatpush1.bf16.msra.mxu0 %v649
        %723 = vmatprep.subr.bf16.mxu0 %v646
        %724 = vmatpush1.bf16.msra.mxu0 %v645
        %725 = vmatprep.subr.bf16.mxu0 0
        %726 = vmatpush2.bf16.msra.mxu0 0
        %727 = vmatprep.subr.bf16.mxu0 0
        %728 = vmatpush2.bf16.msra.mxu0 0
        %729 = vmatprep.subr.bf16.mxu0 0
        %730 = vmatpush2.bf16.msra.mxu0 0
        %731 = vmatprep.subr.bf16.mxu0 0
        %732 = vmatpush2.bf16.msra.mxu0 0
        %733 = vmatprep.subr.bf16.mxu0 0
        %734 = vmatpush2.bf16.msra.mxu0 0
        %735 = vmatprep.subr.bf16.mxu0 0
        %736 = vmatpush2.bf16.msra.mxu0 0
        %737 = vmatprep.subr.bf16.mxu0 0
        %738 = vmatpush2.bf16.msra.mxu0 0
        %739 = vmatprep.subr.bf16.mxu0 0
        %740 = vmatpush2.bf16.msra.mxu0 0
        %741 = vmatprep.mubr.bf16.mxu0 0
        %742 = vmatmul.mubr.bf16.gmra.mxu0 %v477
        %v743 = vpop.f32.mrf.mxu0
        %v744 = vadd.f32 0.0, %v743
        %v745 = vpop.f32.mrf.mxu0
        %v746 = vadd.f32 0.0, %v745
        %v747 = vpop.f32.mrf.mxu0
        %v748 = vadd.f32 0.0, %v747
        %v749 = vpop.f32.mrf.mxu0
        %v750 = vadd.f32 0.0, %v749
        %751 = vmatprep.mubr.bf16.mxu0 0
        %752 = vmatmul.mubr.bf16.gmra.mxu0 %v478
        %v753 = vpop.f32.mrf.mxu0
        %v754 = vadd.f32 0.0, %v753
        %v755 = vpop.f32.mrf.mxu0
        %v756 = vadd.f32 0.0, %v755
        %v757 = vpop.f32.mrf.mxu0
        %v758 = vadd.f32 0.0, %v757
        %v759 = vpop.f32.mrf.mxu0
        %v760 = vadd.f32 0.0, %v759
        %761 = vmatprep.mubr.bf16.mxu0 0
        %762 = vmatmul.mubr.bf16.gmra.mxu0 %v479
        %v763 = vpop.f32.mrf.mxu0
        %v764 = vadd.f32 0.0, %v763
        %v765 = vpop.f32.mrf.mxu0
        %v766 = vadd.f32 0.0, %v765
        %v767 = vpop.f32.mrf.mxu0
        %v768 = vadd.f32 0.0, %v767
        %v769 = vpop.f32.mrf.mxu0
        %v770 = vadd.f32 0.0, %v769
        %771 = vmatprep.mubr.bf16.mxu0 0
        %772 = vmatmul.mubr.bf16.gmra.mxu0 %v480
        %v773 = vpop.f32.mrf.mxu0
        %v774 = vadd.f32 0.0, %v773
        %v775 = vpop.f32.mrf.mxu0
        %v776 = vadd.f32 0.0, %v775
        %v777 = vpop.f32.mrf.mxu0
        %v778 = vadd.f32 0.0, %v777
        %v779 = vpop.f32.mrf.mxu0
        %v780 = vadd.f32 0.0, %v779
        %781 = vmatprep.mubr.bf16.mxu0 0
        %782 = vmatmul.mubr.bf16.gmra.mxu0 %v481
        %v783 = vpop.f32.mrf.mxu0
        %v784 = vadd.f32 0.0, %v783
        %v785 = vpop.f32.mrf.mxu0
        %v786 = vadd.f32 0.0, %v785
        %v787 = vpop.f32.mrf.mxu0
        %v788 = vadd.f32 0.0, %v787
        %v789 = vpop.f32.mrf.mxu0
        %v790 = vadd.f32 0.0, %v789
        %791 = vmatprep.mubr.bf16.mxu0 0
        %792 = vmatmul.mubr.bf16.gmra.mxu0 %v482
        %v793 = vpop.f32.mrf.mxu0
        %v794 = vadd.f32 0.0, %v793
        %v795 = vpop.f32.mrf.mxu0
        %v796 = vadd.f32 0.0, %v795
        %v797 = vpop.f32.mrf.mxu0
        %v798 = vadd.f32 0.0, %v797
        %v799 = vpop.f32.mrf.mxu0
        %v800 = vadd.f32 0.0, %v799
        %801 = vmatprep.mubr.bf16.mxu0 0
        %802 = vmatmul.mubr.bf16.gmra.mxu0 %v483
        %v803 = vpop.f32.mrf.mxu0
        %v804 = vadd.f32 0.0, %v803
        %v805 = vpop.f32.mrf.mxu0
        %v806 = vadd.f32 0.0, %v805
        %v807 = vpop.f32.mrf.mxu0
        %v808 = vadd.f32 0.0, %v807
        %v809 = vpop.f32.mrf.mxu0
        %v810 = vadd.f32 0.0, %v809
        %811 = vmatprep.mubr.bf16.mxu0 0
        %812 = vmatmul.mubr.bf16.gmra.mxu0 %v484
        %v813 = vpop.f32.mrf.mxu0
        %v814 = vadd.f32 0.0, %v813
        %v815 = vpop.f32.mrf.mxu0
        %v816 = vadd.f32 0.0, %v815
        %v817 = vpop.f32.mrf.mxu0
        %v818 = vadd.f32 0.0, %v817
        %v819 = vpop.f32.mrf.mxu0
        %v820 = vadd.f32 0.0, %v819
        %821 = vdwg.mxu0
        %822 = vmatprep.subr.bf16.mxu0 %v676
        %823 = vmatpush1.bf16.msra.mxu0 %v675
        %824 = vmatprep.subr.bf16.mxu0 %v672
        %825 = vmatpush1.bf16.msra.mxu0 %v671
        %826 = vmatprep.subr.bf16.mxu0 %v668
        %827 = vmatpush1.bf16.msra.mxu0 %v667
        %828 = vmatprep.subr.bf16.mxu0 %v664
        %829 = vmatpush1.bf16.msra.mxu0 %v663
        %830 = vmatprep.subr.bf16.mxu0 %v660
        %831 = vmatpush1.bf16.msra.mxu0 %v659
        %832 = vmatprep.subr.bf16.mxu0 %v656
        %833 = vmatpush1.bf16.msra.mxu0 %v655
        %834 = vmatprep.subr.bf16.mxu0 %v652
        %835 = vmatpush1.bf16.msra.mxu0 %v651
        %836 = vmatprep.subr.bf16.mxu0 %v648
        %837 = vmatpush1.bf16.msra.mxu0 %v647
        %838 = vmatprep.subr.bf16.mxu0 0
        %839 = vmatpush2.bf16.msra.mxu0 0
        %840 = vmatprep.subr.bf16.mxu0 0
        %841 = vmatpush2.bf16.msra.mxu0 0
        %842 = vmatprep.subr.bf16.mxu0 0
        %843 = vmatpush2.bf16.msra.mxu0 0
        %844 = vmatprep.subr.bf16.mxu0 0
        %845 = vmatpush2.bf16.msra.mxu0 0
        %846 = vmatprep.subr.bf16.mxu0 0
        %847 = vmatpush2.bf16.msra.mxu0 0
        %848 = vmatprep.subr.bf16.mxu0 0
        %849 = vmatpush2.bf16.msra.mxu0 0
        %850 = vmatprep.subr.bf16.mxu0 0
        %851 = vmatpush2.bf16.msra.mxu0 0
        %852 = vmatprep.subr.bf16.mxu0 0
        %853 = vmatpush2.bf16.msra.mxu0 0
        %854 = vmatprep.mubr.bf16.mxu0 0
        %855 = vmatmul.mubr.bf16.gmra.mxu0 %v477
        %v856 = vpop.f32.mrf.mxu0
        %v857 = vadd.f32 0.0, %v856
        %v858 = vpop.f32.mrf.mxu0
        %v859 = vadd.f32 0.0, %v858
        %v860 = vpop.f32.mrf.mxu0
        %v861 = vadd.f32 0.0, %v860
        %v862 = vpop.f32.mrf.mxu0
        %v863 = vadd.f32 0.0, %v862
        %864 = vmatprep.mubr.bf16.mxu0 0
        %865 = vmatmul.mubr.bf16.gmra.mxu0 %v478
        %v866 = vpop.f32.mrf.mxu0
        %v867 = vadd.f32 0.0, %v866
        %v868 = vpop.f32.mrf.mxu0
        %v869 = vadd.f32 0.0, %v868
        %v870 = vpop.f32.mrf.mxu0
        %v871 = vadd.f32 0.0, %v870
        %v872 = vpop.f32.mrf.mxu0
        %v873 = vadd.f32 0.0, %v872
        %874 = vmatprep.mubr.bf16.mxu0 0
        %875 = vmatmul.mubr.bf16.gmra.mxu0 %v479
        %v876 = vpop.f32.mrf.mxu0
        %v877 = vadd.f32 0.0, %v876
        %v878 = vpop.f32.mrf.mxu0
        %v879 = vadd.f32 0.0, %v878
        %v880 = vpop.f32.mrf.mxu0
        %v881 = vadd.f32 0.0, %v880
        %v882 = vpop.f32.mrf.mxu0
        %v883 = vadd.f32 0.0, %v882
        %884 = vmatprep.mubr.bf16.mxu0 0
        %885 = vmatmul.mubr.bf16.gmra.mxu0 %v480
        %v886 = vpop.f32.mrf.mxu0
        %v887 = vadd.f32 0.0, %v886
        %v888 = vpop.f32.mrf.mxu0
        %v889 = vadd.f32 0.0, %v888
        %v890 = vpop.f32.mrf.mxu0
        %v891 = vadd.f32 0.0, %v890
        %v892 = vpop.f32.mrf.mxu0
        %v893 = vadd.f32 0.0, %v892
        %894 = vmatprep.mubr.bf16.mxu0 0
        %895 = vmatmul.mubr.bf16.gmra.mxu0 %v481
        %v896 = vpop.f32.mrf.mxu0
        %v897 = vadd.f32 0.0, %v896
        %v898 = vpop.f32.mrf.mxu0
        %v899 = vadd.f32 0.0, %v898
        %v900 = vpop.f32.mrf.mxu0
        %v901 = vadd.f32 0.0, %v900
        %v902 = vpop.f32.mrf.mxu0
        %v903 = vadd.f32 0.0, %v902
        %904 = vmatprep.mubr.bf16.mxu0 0
        %905 = vmatmul.mubr.bf16.gmra.mxu0 %v482
        %v906 = vpop.f32.mrf.mxu0
        %v907 = vadd.f32 0.0, %v906
        %v908 = vpop.f32.mrf.mxu0
        %v909 = vadd.f32 0.0, %v908
        %v910 = vpop.f32.mrf.mxu0
        %v911 = vadd.f32 0.0, %v910
        %v912 = vpop.f32.mrf.mxu0
        %v913 = vadd.f32 0.0, %v912
        %914 = vmatprep.mubr.bf16.mxu0 0
        %915 = vmatmul.mubr.bf16.gmra.mxu0 %v483
        %v916 = vpop.f32.mrf.mxu0
        %v917 = vadd.f32 0.0, %v916
        %v918 = vpop.f32.mrf.mxu0
        %v919 = vadd.f32 0.0, %v918
        %v920 = vpop.f32.mrf.mxu0
        %v921 = vadd.f32 0.0, %v920
        %v922 = vpop.f32.mrf.mxu0
        %v923 = vadd.f32 0.0, %v922
        %924 = vmatprep.mubr.bf16.mxu0 0
        %925 = vmatmul.mubr.bf16.gmra.mxu0 %v484
        %v926 = vpop.f32.mrf.mxu0
        %v927 = vadd.f32 0.0, %v926
        %v928 = vpop.f32.mrf.mxu0
        %v929 = vadd.f32 0.0, %v928
        %v930 = vpop.f32.mrf.mxu0
        %v931 = vadd.f32 0.0, %v930
        %v932 = vpop.f32.mrf.mxu0
        %v933 = vadd.f32 0.0, %v932
        %934 = vdwg.mxu0
        %v967 = vunpack.c.l.b16 %v485
        %v968 = vunpack.c.h.b16 %v485
        %v969 = vunpack.c.l.b16 %v486
        %v970 = vunpack.c.h.b16 %v486
        %v971 = vunpack.c.l.b16 %v487
        %v972 = vunpack.c.h.b16 %v487
        %v973 = vunpack.c.l.b16 %v488
        %v974 = vunpack.c.h.b16 %v488
        %v975 = vunpack.c.l.b16 %v489
        %v976 = vunpack.c.h.b16 %v489
        %v977 = vunpack.c.l.b16 %v490
        %v978 = vunpack.c.h.b16 %v490
        %v979 = vunpack.c.l.b16 %v491
        %v980 = vunpack.c.h.b16 %v491
        %v981 = vunpack.c.l.b16 %v492
        %v982 = vunpack.c.h.b16 %v492
        %v983 = vunpack.c.l.b16 %v493
        %v984 = vunpack.c.h.b16 %v493
        %v985 = vunpack.c.l.b16 %v494
        %v986 = vunpack.c.h.b16 %v494
        %v987 = vunpack.c.l.b16 %v495
        %v988 = vunpack.c.h.b16 %v495
        %v989 = vunpack.c.l.b16 %v496
        %v990 = vunpack.c.h.b16 %v496
        %v991 = vunpack.c.l.b16 %v497
        %v992 = vunpack.c.h.b16 %v497
        %v993 = vunpack.c.l.b16 %v498
        %v994 = vunpack.c.h.b16 %v498
        %v995 = vunpack.c.l.b16 %v499
        %v996 = vunpack.c.h.b16 %v499
        %v997 = vunpack.c.l.b16 %v500
        %v998 = vunpack.c.h.b16 %v500
        %v999 = vunpack.c.l.b16 %v501
        %v1000 = vunpack.c.h.b16 %v501
        %v1001 = vunpack.c.l.b16 %v502
        %v1002 = vunpack.c.h.b16 %v502
        %v1003 = vunpack.c.l.b16 %v503
        %v1004 = vunpack.c.h.b16 %v503
        %v1005 = vunpack.c.l.b16 %v504
        %v1006 = vunpack.c.h.b16 %v504
        %v1007 = vunpack.c.l.b16 %v505
        %v1008 = vunpack.c.h.b16 %v505
        %v1009 = vunpack.c.l.b16 %v506
        %v1010 = vunpack.c.h.b16 %v506
        %v1011 = vunpack.c.l.b16 %v507
        %v1012 = vunpack.c.h.b16 %v507
        %v1013 = vunpack.c.l.b16 %v508
        %v1014 = vunpack.c.h.b16 %v508
        %v1015 = vunpack.c.l.b16 %v509
        %v1016 = vunpack.c.h.b16 %v509
        %v1017 = vunpack.c.l.b16 %v510
        %v1018 = vunpack.c.h.b16 %v510
        %v1019 = vunpack.c.l.b16 %v511
        %v1020 = vunpack.c.h.b16 %v511
        %v1021 = vunpack.c.l.b16 %v512
        %v1022 = vunpack.c.h.b16 %v512
        %v1023 = vunpack.c.l.b16 %v513
        %v1024 = vunpack.c.h.b16 %v513
        %v1025 = vunpack.c.l.b16 %v514
        %v1026 = vunpack.c.h.b16 %v514
        %v1027 = vunpack.c.l.b16 %v515
        %v1028 = vunpack.c.h.b16 %v515
        %v1029 = vunpack.c.l.b16 %v516
        %v1030 = vunpack.c.h.b16 %v516
        %v1031 = vpack.c.b16 %v971, %v967
        %v1032 = vpack.c.b16 %v972, %v968
        %v1033 = vpack.c.b16 %v973, %v969
        %v1034 = vpack.c.b16 %v974, %v970
        %v1035 = vpack.c.b16 %v979, %v975
        %v1036 = vpack.c.b16 %v980, %v976
        %v1037 = vpack.c.b16 %v981, %v977
        %v1038 = vpack.c.b16 %v982, %v978
        %v1039 = vpack.c.b16 %v987, %v983
        %v1040 = vpack.c.b16 %v988, %v984
        %v1041 = vpack.c.b16 %v989, %v985
        %v1042 = vpack.c.b16 %v990, %v986
        %v1043 = vpack.c.b16 %v995, %v991
        %v1044 = vpack.c.b16 %v996, %v992
        %v1045 = vpack.c.b16 %v997, %v993
        %v1046 = vpack.c.b16 %v998, %v994
        %v1047 = vpack.c.b16 %v1003, %v999
        %v1048 = vpack.c.b16 %v1004, %v1000
        %v1049 = vpack.c.b16 %v1005, %v1001
        %v1050 = vpack.c.b16 %v1006, %v1002
        %v1051 = vpack.c.b16 %v1011, %v1007
        %v1052 = vpack.c.b16 %v1012, %v1008
        %v1053 = vpack.c.b16 %v1013, %v1009
        %v1054 = vpack.c.b16 %v1014, %v1010
        %v1055 = vpack.c.b16 %v1019, %v1015
        %v1056 = vpack.c.b16 %v1020, %v1016
        %v1057 = vpack.c.b16 %v1021, %v1017
        %v1058 = vpack.c.b16 %v1022, %v1018
        %v1059 = vpack.c.b16 %v1027, %v1023
        %v1060 = vpack.c.b16 %v1028, %v1024
        %v1061 = vpack.c.b16 %v1029, %v1025
        %v1062 = vpack.c.b16 %v1030, %v1026
        %1095 = vmatprep.subr.bf16.mxu0 %v1060
        %1096 = vmatpush1.bf16.msra.mxu0 %v1059
        %1097 = vmatprep.subr.bf16.mxu0 %v1056
        %1098 = vmatpush1.bf16.msra.mxu0 %v1055
        %1099 = vmatprep.subr.bf16.mxu0 %v1052
        %1100 = vmatpush1.bf16.msra.mxu0 %v1051
        %1101 = vmatprep.subr.bf16.mxu0 %v1048
        %1102 = vmatpush1.bf16.msra.mxu0 %v1047
        %1103 = vmatprep.subr.bf16.mxu0 %v1044
        %1104 = vmatpush1.bf16.msra.mxu0 %v1043
        %1105 = vmatprep.subr.bf16.mxu0 %v1040
        %1106 = vmatpush1.bf16.msra.mxu0 %v1039
        %1107 = vmatprep.subr.bf16.mxu0 %v1036
        %1108 = vmatpush1.bf16.msra.mxu0 %v1035
        %1109 = vmatprep.subr.bf16.mxu0 %v1032
        %1110 = vmatpush1.bf16.msra.mxu0 %v1031
        %1111 = vmatprep.subr.bf16.mxu0 0
        %1112 = vmatpush2.bf16.msra.mxu0 0
        %1113 = vmatprep.subr.bf16.mxu0 0
        %1114 = vmatpush2.bf16.msra.mxu0 0
        %1115 = vmatprep.subr.bf16.mxu0 0
        %1116 = vmatpush2.bf16.msra.mxu0 0
        %1117 = vmatprep.subr.bf16.mxu0 0
        %1118 = vmatpush2.bf16.msra.mxu0 0
        %1119 = vmatprep.subr.bf16.mxu0 0
        %1120 = vmatpush2.bf16.msra.mxu0 0
        %1121 = vmatprep.subr.bf16.mxu0 0
        %1122 = vmatpush2.bf16.msra.mxu0 0
        %1123 = vmatprep.subr.bf16.mxu0 0
        %1124 = vmatpush2.bf16.msra.mxu0 0
        %1125 = vmatprep.subr.bf16.mxu0 0
        %1126 = vmatpush2.bf16.msra.mxu0 0
        %1127 = vmatprep.mubr.bf16.mxu0 0
        %1128 = vmatmul.mubr.bf16.gmra.mxu0 %v469
        %v1129 = vpop.f32.mrf.mxu0
        %v1130 = vadd.f32 %v744, %v1129
        %v1131 = vpop.f32.mrf.mxu0
        %v1132 = vadd.f32 %v746, %v1131
        %v1133 = vpop.f32.mrf.mxu0
        %v1134 = vadd.f32 %v748, %v1133
        %v1135 = vpop.f32.mrf.mxu0
        %v1136 = vadd.f32 %v750, %v1135
        %1137 = vmatprep.mubr.bf16.mxu0 0
        %1138 = vmatmul.mubr.bf16.gmra.mxu0 %v470
        %v1139 = vpop.f32.mrf.mxu0
        %v1140 = vadd.f32 %v754, %v1139
        %v1141 = vpop.f32.mrf.mxu0
        %v1142 = vadd.f32 %v756, %v1141
        %v1143 = vpop.f32.mrf.mxu0
        %v1144 = vadd.f32 %v758, %v1143
        %v1145 = vpop.f32.mrf.mxu0
        %v1146 = vadd.f32 %v760, %v1145
        %1147 = vmatprep.mubr.bf16.mxu0 0
        %1148 = vmatmul.mubr.bf16.gmra.mxu0 %v471
        %v1149 = vpop.f32.mrf.mxu0
        %v1150 = vadd.f32 %v764, %v1149
        %v1151 = vpop.f32.mrf.mxu0
        %v1152 = vadd.f32 %v766, %v1151
        %v1153 = vpop.f32.mrf.mxu0
        %v1154 = vadd.f32 %v768, %v1153
        %v1155 = vpop.f32.mrf.mxu0
        %v1156 = vadd.f32 %v770, %v1155
        %1157 = vmatprep.mubr.bf16.mxu0 0
        %1158 = vmatmul.mubr.bf16.gmra.mxu0 %v472
        %v1159 = vpop.f32.mrf.mxu0
        %v1160 = vadd.f32 %v774, %v1159
        %v1161 = vpop.f32.mrf.mxu0
        %v1162 = vadd.f32 %v776, %v1161
        %v1163 = vpop.f32.mrf.mxu0
        %v1164 = vadd.f32 %v778, %v1163
        %v1165 = vpop.f32.mrf.mxu0
        %v1166 = vadd.f32 %v780, %v1165
        %1167 = vmatprep.mubr.bf16.mxu0 0
        %1168 = vmatmul.mubr.bf16.gmra.mxu0 %v473
        %v1169 = vpop.f32.mrf.mxu0
        %v1170 = vadd.f32 %v784, %v1169
        %v1171 = vpop.f32.mrf.mxu0
        %v1172 = vadd.f32 %v786, %v1171
        %v1173 = vpop.f32.mrf.mxu0
        %v1174 = vadd.f32 %v788, %v1173
        %v1175 = vpop.f32.mrf.mxu0
        %v1176 = vadd.f32 %v790, %v1175
        %1177 = vmatprep.mubr.bf16.mxu0 0
        %1178 = vmatmul.mubr.bf16.gmra.mxu0 %v474
        %v1179 = vpop.f32.mrf.mxu0
        %v1180 = vadd.f32 %v794, %v1179
        %v1181 = vpop.f32.mrf.mxu0
        %v1182 = vadd.f32 %v796, %v1181
        %v1183 = vpop.f32.mrf.mxu0
        %v1184 = vadd.f32 %v798, %v1183
        %v1185 = vpop.f32.mrf.mxu0
        %v1186 = vadd.f32 %v800, %v1185
        %1187 = vmatprep.mubr.bf16.mxu0 0
        %1188 = vmatmul.mubr.bf16.gmra.mxu0 %v475
        %v1189 = vpop.f32.mrf.mxu0
        %v1190 = vadd.f32 %v804, %v1189
        %v1191 = vpop.f32.mrf.mxu0
        %v1192 = vadd.f32 %v806, %v1191
        %v1193 = vpop.f32.mrf.mxu0
        %v1194 = vadd.f32 %v808, %v1193
        %v1195 = vpop.f32.mrf.mxu0
        %v1196 = vadd.f32 %v810, %v1195
        %1197 = vmatprep.mubr.bf16.mxu0 0
        %1198 = vmatmul.mubr.bf16.gmra.mxu0 %v476
        %v1199 = vpop.f32.mrf.mxu0
        %v1200 = vadd.f32 %v814, %v1199
        %v1201 = vpop.f32.mrf.mxu0
        %v1202 = vadd.f32 %v816, %v1201
        %v1203 = vpop.f32.mrf.mxu0
        %v1204 = vadd.f32 %v818, %v1203
        %v1205 = vpop.f32.mrf.mxu0
        %v1206 = vadd.f32 %v820, %v1205
        %1207 = vdwg.mxu0
        %1208 = vmatprep.subr.bf16.mxu0 %v1062
        %1209 = vmatpush1.bf16.msra.mxu0 %v1061
        %1210 = vmatprep.subr.bf16.mxu0 %v1058
        %1211 = vmatpush1.bf16.msra.mxu0 %v1057
        %1212 = vmatprep.subr.bf16.mxu0 %v1054
        %1213 = vmatpush1.bf16.msra.mxu0 %v1053
        %1214 = vmatprep.subr.bf16.mxu0 %v1050
        %1215 = vmatpush1.bf16.msra.mxu0 %v1049
        %1216 = vmatprep.subr.bf16.mxu0 %v1046
        %1217 = vmatpush1.bf16.msra.mxu0 %v1045
        %1218 = vmatprep.subr.bf16.mxu0 %v1042
        %1219 = vmatpush1.bf16.msra.mxu0 %v1041
        %1220 = vmatprep.subr.bf16.mxu0 %v1038
        %1221 = vmatpush1.bf16.msra.mxu0 %v1037
        %1222 = vmatprep.subr.bf16.mxu0 %v1034
        %1223 = vmatpush1.bf16.msra.mxu0 %v1033
        %1224 = vmatprep.subr.bf16.mxu0 0
        %1225 = vmatpush2.bf16.msra.mxu0 0
        %1226 = vmatprep.subr.bf16.mxu0 0
        %1227 = vmatpush2.bf16.msra.mxu0 0
        %1228 = vmatprep.subr.bf16.mxu0 0
        %1229 = vmatpush2.bf16.msra.mxu0 0
        %1230 = vmatprep.subr.bf16.mxu0 0
        %1231 = vmatpush2.bf16.msra.mxu0 0
        %1232 = vmatprep.subr.bf16.mxu0 0
        %1233 = vmatpush2.bf16.msra.mxu0 0
        %1234 = vmatprep.subr.bf16.mxu0 0
        %1235 = vmatpush2.bf16.msra.mxu0 0
        %1236 = vmatprep.subr.bf16.mxu0 0
        %1237 = vmatpush2.bf16.msra.mxu0 0
        %1238 = vmatprep.subr.bf16.mxu0 0
        %1239 = vmatpush2.bf16.msra.mxu0 0
        %1240 = vmatprep.mubr.bf16.mxu0 0
        %1241 = vmatmul.mubr.bf16.gmra.mxu0 %v469
        %v1242 = vpop.f32.mrf.mxu0
        %v1243 = vadd.f32 %v857, %v1242
        %v1244 = vpop.f32.mrf.mxu0
        %v1245 = vadd.f32 %v859, %v1244
        %v1246 = vpop.f32.mrf.mxu0
        %v1247 = vadd.f32 %v861, %v1246
        %v1248 = vpop.f32.mrf.mxu0
        %v1249 = vadd.f32 %v863, %v1248
        %1250 = vmatprep.mubr.bf16.mxu0 0
        %1251 = vmatmul.mubr.bf16.gmra.mxu0 %v470
        %v1252 = vpop.f32.mrf.mxu0
        %v1253 = vadd.f32 %v867, %v1252
        %v1254 = vpop.f32.mrf.mxu0
        %v1255 = vadd.f32 %v869, %v1254
        %v1256 = vpop.f32.mrf.mxu0
        %v1257 = vadd.f32 %v871, %v1256
        %v1258 = vpop.f32.mrf.mxu0
        %v1259 = vadd.f32 %v873, %v1258
        %1260 = vmatprep.mubr.bf16.mxu0 0
        %1261 = vmatmul.mubr.bf16.gmra.mxu0 %v471
        %v1262 = vpop.f32.mrf.mxu0
        %v1263 = vadd.f32 %v877, %v1262
        %v1264 = vpop.f32.mrf.mxu0
        %v1265 = vadd.f32 %v879, %v1264
        %v1266 = vpop.f32.mrf.mxu0
        %v1267 = vadd.f32 %v881, %v1266
        %v1268 = vpop.f32.mrf.mxu0
        %v1269 = vadd.f32 %v883, %v1268
        %1270 = vmatprep.mubr.bf16.mxu0 0
        %1271 = vmatmul.mubr.bf16.gmra.mxu0 %v472
        %v1272 = vpop.f32.mrf.mxu0
        %v1273 = vadd.f32 %v887, %v1272
        %v1274 = vpop.f32.mrf.mxu0
        %v1275 = vadd.f32 %v889, %v1274
        %v1276 = vpop.f32.mrf.mxu0
        %v1277 = vadd.f32 %v891, %v1276
        %v1278 = vpop.f32.mrf.mxu0
        %v1279 = vadd.f32 %v893, %v1278
        %1280 = vmatprep.mubr.bf16.mxu0 0
        %1281 = vmatmul.mubr.bf16.gmra.mxu0 %v473
        %v1282 = vpop.f32.mrf.mxu0
        %v1283 = vadd.f32 %v897, %v1282
        %v1284 = vpop.f32.mrf.mxu0
        %v1285 = vadd.f32 %v899, %v1284
        %v1286 = vpop.f32.mrf.mxu0
        %v1287 = vadd.f32 %v901, %v1286
        %v1288 = vpop.f32.mrf.mxu0
        %v1289 = vadd.f32 %v903, %v1288
        %1290 = vmatprep.mubr.bf16.mxu0 0
        %1291 = vmatmul.mubr.bf16.gmra.mxu0 %v474
        %v1292 = vpop.f32.mrf.mxu0
        %v1293 = vadd.f32 %v907, %v1292
        %v1294 = vpop.f32.mrf.mxu0
        %v1295 = vadd.f32 %v909, %v1294
        %v1296 = vpop.f32.mrf.mxu0
        %v1297 = vadd.f32 %v911, %v1296
        %v1298 = vpop.f32.mrf.mxu0
        %v1299 = vadd.f32 %v913, %v1298
        %1300 = vmatprep.mubr.bf16.mxu0 0
        %1301 = vmatmul.mubr.bf16.gmra.mxu0 %v475
        %v1302 = vpop.f32.mrf.mxu0
        %v1303 = vadd.f32 %v917, %v1302
        %v1304 = vpop.f32.mrf.mxu0
        %v1305 = vadd.f32 %v919, %v1304
        %v1306 = vpop.f32.mrf.mxu0
        %v1307 = vadd.f32 %v921, %v1306
        %v1308 = vpop.f32.mrf.mxu0
        %v1309 = vadd.f32 %v923, %v1308
        %1310 = vmatprep.mubr.bf16.mxu0 0
        %1311 = vmatmul.mubr.bf16.gmra.mxu0 %v476
        %v1312 = vpop.f32.mrf.mxu0
        %v1313 = vadd.f32 %v927, %v1312
        %v1314 = vpop.f32.mrf.mxu0
        %v1315 = vadd.f32 %v929, %v1314
        %v1316 = vpop.f32.mrf.mxu0
        %v1317 = vadd.f32 %v931, %v1316
        %v1318 = vpop.f32.mrf.mxu0
        %v1319 = vadd.f32 %v933, %v1318
        %1320 = vdwg.mxu0
        %v1321 = vld [vmem:[%s4] sm:$0xf]
        %v1323 = vlaneseq
        %v1324 = vshrl.u32 %v1323, 7
        %v1325 = vsub.s32 0, %v1324
        %v1326 = vrot.slane %v1321, %v1325
        %v1327 = vlaneseq
        %v1328 = vshrl.u32 %v1327, 7
        %v1329 = vsub.s32 1, %v1328
        %v1330 = vrot.slane %v1321, %v1329
        %v1331 = vlaneseq
        %v1332 = vshrl.u32 %v1331, 7
        %v1333 = vsub.s32 2, %v1332
        %v1334 = vrot.slane %v1321, %v1333
        %v1335 = vlaneseq
        %v1336 = vshrl.u32 %v1335, 7
        %v1337 = vsub.s32 3, %v1336
        %v1338 = vrot.slane %v1321, %v1337
        %v1343 = vadd.f32 %v1130, %v1326
        %v1344 = vadd.f32 %v1132, %v1330
        %v1345 = vadd.f32 %v1243, %v1334
        %v1346 = vadd.f32 %v1245, %v1338
        %v1347 = vadd.f32 %v1134, %v1326
        %v1348 = vadd.f32 %v1136, %v1330
        %v1349 = vadd.f32 %v1247, %v1334
        %v1350 = vadd.f32 %v1249, %v1338
        %v1351 = vadd.f32 %v1140, %v1326
        %v1352 = vadd.f32 %v1142, %v1330
        %v1353 = vadd.f32 %v1253, %v1334
        %v1354 = vadd.f32 %v1255, %v1338
        %v1355 = vadd.f32 %v1144, %v1326
        %v1356 = vadd.f32 %v1146, %v1330
        %v1357 = vadd.f32 %v1257, %v1334
        %v1358 = vadd.f32 %v1259, %v1338
        %v1359 = vadd.f32 %v1150, %v1326
        %v1360 = vadd.f32 %v1152, %v1330
        %v1361 = vadd.f32 %v1263, %v1334
        %v1362 = vadd.f32 %v1265, %v1338
        %v1363 = vadd.f32 %v1154, %v1326
        %v1364 = vadd.f32 %v1156, %v1330
        %v1365 = vadd.f32 %v1267, %v1334
        %v1366 = vadd.f32 %v1269, %v1338
        %v1367 = vadd.f32 %v1160, %v1326
        %v1368 = vadd.f32 %v1162, %v1330
        %v1369 = vadd.f32 %v1273, %v1334
        %v1370 = vadd.f32 %v1275, %v1338
        %v1371 = vadd.f32 %v1164, %v1326
        %v1372 = vadd.f32 %v1166, %v1330
        %v1373 = vadd.f32 %v1277, %v1334
        %v1374 = vadd.f32 %v1279, %v1338
        %v1375 = vadd.f32 %v1170, %v1326
        %v1376 = vadd.f32 %v1172, %v1330
        %v1377 = vadd.f32 %v1283, %v1334
        %v1378 = vadd.f32 %v1285, %v1338
        %v1379 = vadd.f32 %v1174, %v1326
        %v1380 = vadd.f32 %v1176, %v1330
        %v1381 = vadd.f32 %v1287, %v1334
        %v1382 = vadd.f32 %v1289, %v1338
        %v1383 = vadd.f32 %v1180, %v1326
        %v1384 = vadd.f32 %v1182, %v1330
        %v1385 = vadd.f32 %v1293, %v1334
        %v1386 = vadd.f32 %v1295, %v1338
        %v1387 = vadd.f32 %v1184, %v1326
        %v1388 = vadd.f32 %v1186, %v1330
        %v1389 = vadd.f32 %v1297, %v1334
        %v1390 = vadd.f32 %v1299, %v1338
        %v1391 = vadd.f32 %v1190, %v1326
        %v1392 = vadd.f32 %v1192, %v1330
        %v1393 = vadd.f32 %v1303, %v1334
        %v1394 = vadd.f32 %v1305, %v1338
        %v1395 = vadd.f32 %v1194, %v1326
        %v1396 = vadd.f32 %v1196, %v1330
        %v1397 = vadd.f32 %v1307, %v1334
        %v1398 = vadd.f32 %v1309, %v1338
        %v1399 = vadd.f32 %v1200, %v1326
        %v1400 = vadd.f32 %v1202, %v1330
        %v1401 = vadd.f32 %v1313, %v1334
        %v1402 = vadd.f32 %v1315, %v1338
        %v1403 = vadd.f32 %v1204, %v1326
        %v1404 = vadd.f32 %v1206, %v1330
        %v1405 = vadd.f32 %v1317, %v1334
        %v1406 = vadd.f32 %v1319, %v1338
        %v1407 = vmax.f32 %v1343, 0.0
        %v1408 = vmax.f32 %v1344, 0.0
        %v1409 = vmax.f32 %v1345, 0.0
        %v1410 = vmax.f32 %v1346, 0.0
        %v1411 = vmax.f32 %v1347, 0.0
        %v1412 = vmax.f32 %v1348, 0.0
        %v1413 = vmax.f32 %v1349, 0.0
        %v1414 = vmax.f32 %v1350, 0.0
        %v1415 = vmax.f32 %v1351, 0.0
        %v1416 = vmax.f32 %v1352, 0.0
        %v1417 = vmax.f32 %v1353, 0.0
        %v1418 = vmax.f32 %v1354, 0.0
        %v1419 = vmax.f32 %v1355, 0.0
        %v1420 = vmax.f32 %v1356, 0.0
        %v1421 = vmax.f32 %v1357, 0.0
        %v1422 = vmax.f32 %v1358, 0.0
        %v1423 = vmax.f32 %v1359, 0.0
        %v1424 = vmax.f32 %v1360, 0.0
        %v1425 = vmax.f32 %v1361, 0.0
        %v1426 = vmax.f32 %v1362, 0.0
        %v1427 = vmax.f32 %v1363, 0.0
        %v1428 = vmax.f32 %v1364, 0.0
        %v1429 = vmax.f32 %v1365, 0.0
        %v1430 = vmax.f32 %v1366, 0.0
        %v1431 = vmax.f32 %v1367, 0.0
        %v1432 = vmax.f32 %v1368, 0.0
        %v1433 = vmax.f32 %v1369, 0.0
        %v1434 = vmax.f32 %v1370, 0.0
        %v1435 = vmax.f32 %v1371, 0.0
        %v1436 = vmax.f32 %v1372, 0.0
        %v1437 = vmax.f32 %v1373, 0.0
        %v1438 = vmax.f32 %v1374, 0.0
        %v1439 = vmax.f32 %v1375, 0.0
        %v1440 = vmax.f32 %v1376, 0.0
        %v1441 = vmax.f32 %v1377, 0.0
        %v1442 = vmax.f32 %v1378, 0.0
        %v1443 = vmax.f32 %v1379, 0.0
        %v1444 = vmax.f32 %v1380, 0.0
        %v1445 = vmax.f32 %v1381, 0.0
        %v1446 = vmax.f32 %v1382, 0.0
        %v1447 = vmax.f32 %v1383, 0.0
        %v1448 = vmax.f32 %v1384, 0.0
        %v1449 = vmax.f32 %v1385, 0.0
        %v1450 = vmax.f32 %v1386, 0.0
        %v1451 = vmax.f32 %v1387, 0.0
        %v1452 = vmax.f32 %v1388, 0.0
        %v1453 = vmax.f32 %v1389, 0.0
        %v1454 = vmax.f32 %v1390, 0.0
        %v1455 = vmax.f32 %v1391, 0.0
        %v1456 = vmax.f32 %v1392, 0.0
        %v1457 = vmax.f32 %v1393, 0.0
        %v1458 = vmax.f32 %v1394, 0.0
        %v1459 = vmax.f32 %v1395, 0.0
        %v1460 = vmax.f32 %v1396, 0.0
        %v1461 = vmax.f32 %v1397, 0.0
        %v1462 = vmax.f32 %v1398, 0.0
        %v1463 = vmax.f32 %v1399, 0.0
        %v1464 = vmax.f32 %v1400, 0.0
        %v1465 = vmax.f32 %v1401, 0.0
        %v1466 = vmax.f32 %v1402, 0.0
        %v1467 = vmax.f32 %v1403, 0.0
        %v1468 = vmax.f32 %v1404, 0.0
        %v1469 = vmax.f32 %v1405, 0.0
        %v1470 = vmax.f32 %v1406, 0.0
        %v1471 = vpack.c.bf16 %v1411, %v1407
        %v1472 = vpack.c.bf16 %v1412, %v1408
        %v1473 = vpack.c.bf16 %v1413, %v1409
        %v1474 = vpack.c.bf16 %v1414, %v1410
        %v1475 = vpack.c.bf16 %v1419, %v1415
        %v1476 = vpack.c.bf16 %v1420, %v1416
        %v1477 = vpack.c.bf16 %v1421, %v1417
        %v1478 = vpack.c.bf16 %v1422, %v1418
        %v1479 = vpack.c.bf16 %v1427, %v1423
        %v1480 = vpack.c.bf16 %v1428, %v1424
        %v1481 = vpack.c.bf16 %v1429, %v1425
        %v1482 = vpack.c.bf16 %v1430, %v1426
        %v1483 = vpack.c.bf16 %v1435, %v1431
        %v1484 = vpack.c.bf16 %v1436, %v1432
        %v1485 = vpack.c.bf16 %v1437, %v1433
        %v1486 = vpack.c.bf16 %v1438, %v1434
        %v1487 = vpack.c.bf16 %v1443, %v1439
        %v1488 = vpack.c.bf16 %v1444, %v1440
        %v1489 = vpack.c.bf16 %v1445, %v1441
        %v1490 = vpack.c.bf16 %v1446, %v1442
        %v1491 = vpack.c.bf16 %v1451, %v1447
        %v1492 = vpack.c.bf16 %v1452, %v1448
        %v1493 = vpack.c.bf16 %v1453, %v1449
        %v1494 = vpack.c.bf16 %v1454, %v1450
        %v1495 = vpack.c.bf16 %v1459, %v1455
        %v1496 = vpack.c.bf16 %v1460, %v1456
        %v1497 = vpack.c.bf16 %v1461, %v1457
        %v1498 = vpack.c.bf16 %v1462, %v1458
        %v1499 = vpack.c.bf16 %v1467, %v1463
        %v1500 = vpack.c.bf16 %v1468, %v1464
        %v1501 = vpack.c.bf16 %v1469, %v1465
        %v1502 = vpack.c.bf16 %v1470, %v1466
        %v1503 = vld [vmem:[#allocation11] sm:$0xf]
        %v1504 = vld [vmem:[#allocation11 + $0x4] sm:$0xf]
        %v1505 = vld [vmem:[#allocation11 + $0x8] sm:$0xf]
        %v1506 = vld [vmem:[#allocation11 + $0xc] sm:$0xf]
        %v1507 = vld [vmem:[#allocation11 + $0x10] sm:$0xf]
        %v1508 = vld [vmem:[#allocation11 + $0x14] sm:$0xf]
        %v1509 = vld [vmem:[#allocation11 + $0x18] sm:$0xf]
        %v1510 = vld [vmem:[#allocation11 + $0x1c] sm:$0xf]
        %v1511 = vld [vmem:[#allocation11 + $0x20] sm:$0xf]
        %v1512 = vld [vmem:[#allocation11 + $0x24] sm:$0xf]
        %v1513 = vld [vmem:[#allocation11 + $0x28] sm:$0xf]
        %v1514 = vld [vmem:[#allocation11 + $0x2c] sm:$0xf]
        %v1515 = vld [vmem:[#allocation11 + $0x30] sm:$0xf]
        %v1516 = vld [vmem:[#allocation11 + $0x34] sm:$0xf]
        %v1517 = vld [vmem:[#allocation11 + $0x38] sm:$0xf]
        %v1518 = vld [vmem:[#allocation11 + $0x3c] sm:$0xf]
        %v1519 = vld [vmem:[#allocation11 + $0x40] sm:$0xf]
        %v1520 = vld [vmem:[#allocation11 + $0x44] sm:$0xf]
        %v1521 = vld [vmem:[#allocation11 + $0x48] sm:$0xf]
        %v1522 = vld [vmem:[#allocation11 + $0x4c] sm:$0xf]
        %v1523 = vld [vmem:[#allocation11 + $0x50] sm:$0xf]
        %v1524 = vld [vmem:[#allocation11 + $0x54] sm:$0xf]
        %v1525 = vld [vmem:[#allocation11 + $0x58] sm:$0xf]
        %v1526 = vld [vmem:[#allocation11 + $0x5c] sm:$0xf]
        %v1527 = vld [vmem:[#allocation11 + $0x60] sm:$0xf]
        %v1528 = vld [vmem:[#allocation11 + $0x64] sm:$0xf]
        %v1529 = vld [vmem:[#allocation11 + $0x68] sm:$0xf]
        %v1530 = vld [vmem:[#allocation11 + $0x6c] sm:$0xf]
        %v1531 = vld [vmem:[#allocation11 + $0x70] sm:$0xf]
        %v1532 = vld [vmem:[#allocation11 + $0x74] sm:$0xf]
        %v1533 = vld [vmem:[#allocation11 + $0x78] sm:$0xf]
        %v1534 = vld [vmem:[#allocation11 + $0x7c] sm:$0xf]
        %v1535 = vld [vmem:[#allocation11 + $0x80] sm:$0xf]
        %v1536 = vld [vmem:[#allocation11 + $0x84] sm:$0xf]
        %v1537 = vld [vmem:[#allocation11 + $0x88] sm:$0xf]
        %v1538 = vld [vmem:[#allocation11 + $0x8c] sm:$0xf]
        %v1539 = vld [vmem:[#allocation11 + $0x90] sm:$0xf]
        %v1540 = vld [vmem:[#allocation11 + $0x94] sm:$0xf]
        %v1541 = vld [vmem:[#allocation11 + $0x98] sm:$0xf]
        %v1542 = vld [vmem:[#allocation11 + $0x9c] sm:$0xf]
        %v1543 = vld [vmem:[#allocation11 + $0xa0] sm:$0xf]
        %v1544 = vld [vmem:[#allocation11 + $0xa4] sm:$0xf]
        %v1545 = vld [vmem:[#allocation11 + $0xa8] sm:$0xf]
        %v1546 = vld [vmem:[#allocation11 + $0xac] sm:$0xf]
        %v1547 = vld [vmem:[#allocation11 + $0xb0] sm:$0xf]
        %v1548 = vld [vmem:[#allocation11 + $0xb4] sm:$0xf]
        %v1549 = vld [vmem:[#allocation11 + $0xb8] sm:$0xf]
        %v1550 = vld [vmem:[#allocation11 + $0xbc] sm:$0xf]
        %v1551 = vld [vmem:[#allocation11 + $0xc0] sm:$0xf]
        %v1552 = vld [vmem:[#allocation11 + $0xc4] sm:$0xf]
        %v1553 = vld [vmem:[#allocation11 + $0xc8] sm:$0xf]
        %v1554 = vld [vmem:[#allocation11 + $0xcc] sm:$0xf]
        %v1555 = vld [vmem:[#allocation11 + $0xd0] sm:$0xf]
        %v1556 = vld [vmem:[#allocation11 + $0xd4] sm:$0xf]
        %v1557 = vld [vmem:[#allocation11 + $0xd8] sm:$0xf]
        %v1558 = vld [vmem:[#allocation11 + $0xdc] sm:$0xf]
        %v1559 = vld [vmem:[#allocation11 + $0xe0] sm:$0xf]
        %v1560 = vld [vmem:[#allocation11 + $0xe4] sm:$0xf]
        %v1561 = vld [vmem:[#allocation11 + $0xe8] sm:$0xf]
        %v1562 = vld [vmem:[#allocation11 + $0xec] sm:$0xf]
        %v1563 = vld [vmem:[#allocation11 + $0xf0] sm:$0xf]
        %v1564 = vld [vmem:[#allocation11 + $0xf4] sm:$0xf]
        %v1565 = vld [vmem:[#allocation11 + $0xf8] sm:$0xf]
        %v1566 = vld [vmem:[#allocation11 + $0xfc] sm:$0xf]
        %v1567 = vld [vmem:[%s6] sm:$0x1]
        %v1569 = vlaneseq
        %v1570 = vshrl.u32 %v1569, 7
        %v1571 = vsub.s32 0, %v1570
        %v1572 = vrot.slane %v1567, %v1571
        %v1638 = vunpack.c.l.b16 %v1503
        %v1639 = vunpack.c.l.b16 %v1504
        %v1640 = vunpack.c.l.b16 %v1505
        %v1641 = vunpack.c.l.b16 %v1506
        %v1642 = vunpack.c.l.b16 %v1507
        %v1643 = vunpack.c.l.b16 %v1508
        %v1644 = vunpack.c.l.b16 %v1509
        %v1645 = vunpack.c.l.b16 %v1510
        %v1646 = vunpack.c.l.b16 %v1511
        %v1647 = vunpack.c.l.b16 %v1512
        %v1648 = vunpack.c.l.b16 %v1513
        %v1649 = vunpack.c.l.b16 %v1514
        %v1650 = vunpack.c.l.b16 %v1515
        %v1651 = vunpack.c.l.b16 %v1516
        %v1652 = vunpack.c.l.b16 %v1517
        %v1653 = vunpack.c.l.b16 %v1518
        %v1654 = vunpack.c.l.b16 %v1519
        %v1655 = vunpack.c.l.b16 %v1520
        %v1656 = vunpack.c.l.b16 %v1521
        %v1657 = vunpack.c.l.b16 %v1522
        %v1658 = vunpack.c.l.b16 %v1523
        %v1659 = vunpack.c.l.b16 %v1524
        %v1660 = vunpack.c.l.b16 %v1525
        %v1661 = vunpack.c.l.b16 %v1526
        %v1662 = vunpack.c.l.b16 %v1527
        %v1663 = vunpack.c.l.b16 %v1528
        %v1664 = vunpack.c.l.b16 %v1529
        %v1665 = vunpack.c.l.b16 %v1530
        %v1666 = vunpack.c.l.b16 %v1531
        %v1667 = vunpack.c.l.b16 %v1532
        %v1668 = vunpack.c.l.b16 %v1533
        %v1669 = vunpack.c.l.b16 %v1534
        %v1670 = vunpack.c.l.b16 %v1535
        %v1671 = vunpack.c.l.b16 %v1536
        %v1672 = vunpack.c.l.b16 %v1537
        %v1673 = vunpack.c.l.b16 %v1538
        %v1674 = vunpack.c.l.b16 %v1539
        %v1675 = vunpack.c.l.b16 %v1540
        %v1676 = vunpack.c.l.b16 %v1541
        %v1677 = vunpack.c.l.b16 %v1542
        %v1678 = vunpack.c.l.b16 %v1543
        %v1679 = vunpack.c.l.b16 %v1544
        %v1680 = vunpack.c.l.b16 %v1545
        %v1681 = vunpack.c.l.b16 %v1546
        %v1682 = vunpack.c.l.b16 %v1547
        %v1683 = vunpack.c.l.b16 %v1548
        %v1684 = vunpack.c.l.b16 %v1549
        %v1685 = vunpack.c.l.b16 %v1550
        %v1686 = vunpack.c.l.b16 %v1551
        %v1687 = vunpack.c.l.b16 %v1552
        %v1688 = vunpack.c.l.b16 %v1553
        %v1689 = vunpack.c.l.b16 %v1554
        %v1690 = vunpack.c.l.b16 %v1555
        %v1691 = vunpack.c.l.b16 %v1556
        %v1692 = vunpack.c.l.b16 %v1557
        %v1693 = vunpack.c.l.b16 %v1558
        %v1694 = vunpack.c.l.b16 %v1559
        %v1695 = vunpack.c.l.b16 %v1560
        %v1696 = vunpack.c.l.b16 %v1561
        %v1697 = vunpack.c.l.b16 %v1562
        %v1698 = vunpack.c.l.b16 %v1563
        %v1699 = vunpack.c.l.b16 %v1564
        %v1700 = vunpack.c.l.b16 %v1565
        %v1701 = vunpack.c.l.b16 %v1566
        %v1702 = vpack.c.b16 %v1639, %v1638
        %v1703 = vpack.c.b16 %v1641, %v1640
        %v1704 = vpack.c.b16 %v1643, %v1642
        %v1705 = vpack.c.b16 %v1645, %v1644
        %v1706 = vpack.c.b16 %v1647, %v1646
        %v1707 = vpack.c.b16 %v1649, %v1648
        %v1708 = vpack.c.b16 %v1651, %v1650
        %v1709 = vpack.c.b16 %v1653, %v1652
        %v1710 = vpack.c.b16 %v1655, %v1654
        %v1711 = vpack.c.b16 %v1657, %v1656
        %v1712 = vpack.c.b16 %v1659, %v1658
        %v1713 = vpack.c.b16 %v1661, %v1660
        %v1714 = vpack.c.b16 %v1663, %v1662
        %v1715 = vpack.c.b16 %v1665, %v1664
        %v1716 = vpack.c.b16 %v1667, %v1666
        %v1717 = vpack.c.b16 %v1669, %v1668
        %v1718 = vpack.c.b16 %v1671, %v1670
        %v1719 = vpack.c.b16 %v1673, %v1672
        %v1720 = vpack.c.b16 %v1675, %v1674
        %v1721 = vpack.c.b16 %v1677, %v1676
        %v1722 = vpack.c.b16 %v1679, %v1678
        %v1723 = vpack.c.b16 %v1681, %v1680
        %v1724 = vpack.c.b16 %v1683, %v1682
        %v1725 = vpack.c.b16 %v1685, %v1684
        %v1726 = vpack.c.b16 %v1687, %v1686
        %v1727 = vpack.c.b16 %v1689, %v1688
        %v1728 = vpack.c.b16 %v1691, %v1690
        %v1729 = vpack.c.b16 %v1693, %v1692
        %v1730 = vpack.c.b16 %v1695, %v1694
        %v1731 = vpack.c.b16 %v1697, %v1696
        %v1732 = vpack.c.b16 %v1699, %v1698
        %v1733 = vpack.c.b16 %v1701, %v1700
        %1766 = vmatprep.subr.bf16.mxu0 0
        %1767 = vmatpush1.bf16.msra.mxu0 %v1709
        %1768 = vmatprep.subr.bf16.mxu0 0
        %1769 = vmatpush1.bf16.msra.mxu0 %v1708
        %1770 = vmatprep.subr.bf16.mxu0 0
        %1771 = vmatpush1.bf16.msra.mxu0 %v1707
        %1772 = vmatprep.subr.bf16.mxu0 0
        %1773 = vmatpush1.bf16.msra.mxu0 %v1706
        %1774 = vmatprep.subr.bf16.mxu0 0
        %1775 = vmatpush1.bf16.msra.mxu0 %v1705
        %1776 = vmatprep.subr.bf16.mxu0 0
        %1777 = vmatpush1.bf16.msra.mxu0 %v1704
        %1778 = vmatprep.subr.bf16.mxu0 0
        %1779 = vmatpush1.bf16.msra.mxu0 %v1703
        %1780 = vmatprep.subr.bf16.mxu0 0
        %1781 = vmatpush1.bf16.msra.mxu0 %v1702
        %1782 = vmatprep.subr.bf16.mxu0 0
        %1783 = vmatpush2.bf16.msra.mxu0 %v1717
        %1784 = vmatprep.subr.bf16.mxu0 0
        %1785 = vmatpush2.bf16.msra.mxu0 %v1716
        %1786 = vmatprep.subr.bf16.mxu0 0
        %1787 = vmatpush2.bf16.msra.mxu0 %v1715
        %1788 = vmatprep.subr.bf16.mxu0 0
        %1789 = vmatpush2.bf16.msra.mxu0 %v1714
        %1790 = vmatprep.subr.bf16.mxu0 0
        %1791 = vmatpush2.bf16.msra.mxu0 %v1713
        %1792 = vmatprep.subr.bf16.mxu0 0
        %1793 = vmatpush2.bf16.msra.mxu0 %v1712
        %1794 = vmatprep.subr.bf16.mxu0 0
        %1795 = vmatpush2.bf16.msra.mxu0 %v1711
        %1796 = vmatprep.subr.bf16.mxu0 0
        %1797 = vmatpush2.bf16.msra.mxu0 %v1710
        %1798 = vmatprep.mubr.bf16.mxu0 %v1472
        %1799 = vmatmul.mubr.bf16.gmra.mxu0 %v1471
        %v1800 = vpop.f32.mrf.mxu0
        %v1801 = vadd.f32 %v1572, %v1800
        %v1802 = vpop.f32.mrf.mxu0
        %v1803 = vpop.f32.mrf.mxu0
        %v1804 = vadd.f32 %v1572, %v1803
        %v1805 = vpop.f32.mrf.mxu0
        %1806 = vmatprep.mubr.bf16.mxu0 %v1476
        %1807 = vmatmul.mubr.bf16.gmra.mxu0 %v1475
        %v1808 = vpop.f32.mrf.mxu0
        %v1809 = vadd.f32 %v1572, %v1808
        %v1810 = vpop.f32.mrf.mxu0
        %v1811 = vpop.f32.mrf.mxu0
        %v1812 = vadd.f32 %v1572, %v1811
        %v1813 = vpop.f32.mrf.mxu0
        %1814 = vmatprep.mubr.bf16.mxu0 %v1480
        %1815 = vmatmul.mubr.bf16.gmra.mxu0 %v1479
        %v1816 = vpop.f32.mrf.mxu0
        %v1817 = vadd.f32 %v1572, %v1816
        %v1818 = vpop.f32.mrf.mxu0
        %v1819 = vpop.f32.mrf.mxu0
        %v1820 = vadd.f32 %v1572, %v1819
        %v1821 = vpop.f32.mrf.mxu0
        %1822 = vmatprep.mubr.bf16.mxu0 %v1484
        %1823 = vmatmul.mubr.bf16.gmra.mxu0 %v1483
        %v1824 = vpop.f32.mrf.mxu0
        %v1825 = vadd.f32 %v1572, %v1824
        %v1826 = vpop.f32.mrf.mxu0
        %v1827 = vpop.f32.mrf.mxu0
        %v1828 = vadd.f32 %v1572, %v1827
        %v1829 = vpop.f32.mrf.mxu0
        %1830 = vmatprep.mubr.bf16.mxu0 %v1488
        %1831 = vmatmul.mubr.bf16.gmra.mxu0 %v1487
        %v1832 = vpop.f32.mrf.mxu0
        %v1833 = vadd.f32 %v1572, %v1832
        %v1834 = vpop.f32.mrf.mxu0
        %v1835 = vpop.f32.mrf.mxu0
        %v1836 = vadd.f32 %v1572, %v1835
        %v1837 = vpop.f32.mrf.mxu0
        %1838 = vmatprep.mubr.bf16.mxu0 %v1492
        %1839 = vmatmul.mubr.bf16.gmra.mxu0 %v1491
        %v1840 = vpop.f32.mrf.mxu0
        %v1841 = vadd.f32 %v1572, %v1840
        %v1842 = vpop.f32.mrf.mxu0
        %v1843 = vpop.f32.mrf.mxu0
        %v1844 = vadd.f32 %v1572, %v1843
        %v1845 = vpop.f32.mrf.mxu0
        %1846 = vmatprep.mubr.bf16.mxu0 %v1496
        %1847 = vmatmul.mubr.bf16.gmra.mxu0 %v1495
        %v1848 = vpop.f32.mrf.mxu0
        %v1849 = vadd.f32 %v1572, %v1848
        %v1850 = vpop.f32.mrf.mxu0
        %v1851 = vpop.f32.mrf.mxu0
        %v1852 = vadd.f32 %v1572, %v1851
        %v1853 = vpop.f32.mrf.mxu0
        %1854 = vmatprep.mubr.bf16.mxu0 %v1500
        %1855 = vmatmul.mubr.bf16.gmra.mxu0 %v1499
        %v1856 = vpop.f32.mrf.mxu0
        %v1857 = vadd.f32 %v1572, %v1856
        %v1858 = vpop.f32.mrf.mxu0
        %v1859 = vpop.f32.mrf.mxu0
        %v1860 = vadd.f32 %v1572, %v1859
        %v1861 = vpop.f32.mrf.mxu0
        %1862 = vdwg.mxu0
        %1863 = vmatprep.subr.bf16.mxu0 0
        %1864 = vmatpush1.bf16.msra.mxu0 %v1725
        %1865 = vmatprep.subr.bf16.mxu0 0
        %1866 = vmatpush1.bf16.msra.mxu0 %v1724
        %1867 = vmatprep.subr.bf16.mxu0 0
        %1868 = vmatpush1.bf16.msra.mxu0 %v1723
        %1869 = vmatprep.subr.bf16.mxu0 0
        %1870 = vmatpush1.bf16.msra.mxu0 %v1722
        %1871 = vmatprep.subr.bf16.mxu0 0
        %1872 = vmatpush1.bf16.msra.mxu0 %v1721
        %1873 = vmatprep.subr.bf16.mxu0 0
        %1874 = vmatpush1.bf16.msra.mxu0 %v1720
        %1875 = vmatprep.subr.bf16.mxu0 0
        %1876 = vmatpush1.bf16.msra.mxu0 %v1719
        %1877 = vmatprep.subr.bf16.mxu0 0
        %1878 = vmatpush1.bf16.msra.mxu0 %v1718
        %1879 = vmatprep.subr.bf16.mxu0 0
        %1880 = vmatpush2.bf16.msra.mxu0 %v1733
        %1881 = vmatprep.subr.bf16.mxu0 0
        %1882 = vmatpush2.bf16.msra.mxu0 %v1732
        %1883 = vmatprep.subr.bf16.mxu0 0
        %1884 = vmatpush2.bf16.msra.mxu0 %v1731
        %1885 = vmatprep.subr.bf16.mxu0 0
        %1886 = vmatpush2.bf16.msra.mxu0 %v1730
        %1887 = vmatprep.subr.bf16.mxu0 0
        %1888 = vmatpush2.bf16.msra.mxu0 %v1729
        %1889 = vmatprep.subr.bf16.mxu0 0
        %1890 = vmatpush2.bf16.msra.mxu0 %v1728
        %1891 = vmatprep.subr.bf16.mxu0 0
        %1892 = vmatpush2.bf16.msra.mxu0 %v1727
        %1893 = vmatprep.subr.bf16.mxu0 0
        %1894 = vmatpush2.bf16.msra.mxu0 %v1726
        %1895 = vmatprep.mubr.bf16.mxu0 %v1474
        %1896 = vmatmul.mubr.bf16.gmra.mxu0 %v1473
        %v1897 = vpop.f32.mrf.mxu0
        %v1898 = vadd.f32 %v1801, %v1897
        %v1899 = vpop.f32.mrf.mxu0
        %v1900 = vpop.f32.mrf.mxu0
        %v1901 = vadd.f32 %v1804, %v1900
        %v1902 = vpop.f32.mrf.mxu0
        %1903 = vmatprep.mubr.bf16.mxu0 %v1478
        %1904 = vmatmul.mubr.bf16.gmra.mxu0 %v1477
        %v1905 = vpop.f32.mrf.mxu0
        %v1906 = vadd.f32 %v1809, %v1905
        %v1907 = vpop.f32.mrf.mxu0
        %v1908 = vpop.f32.mrf.mxu0
        %v1909 = vadd.f32 %v1812, %v1908
        %v1910 = vpop.f32.mrf.mxu0
        %1911 = vmatprep.mubr.bf16.mxu0 %v1482
        %1912 = vmatmul.mubr.bf16.gmra.mxu0 %v1481
        %v1913 = vpop.f32.mrf.mxu0
        %v1914 = vadd.f32 %v1817, %v1913
        %v1915 = vpop.f32.mrf.mxu0
        %v1916 = vpop.f32.mrf.mxu0
        %v1917 = vadd.f32 %v1820, %v1916
        %v1918 = vpop.f32.mrf.mxu0
        %1919 = vmatprep.mubr.bf16.mxu0 %v1486
        %1920 = vmatmul.mubr.bf16.gmra.mxu0 %v1485
        %v1921 = vpop.f32.mrf.mxu0
        %v1922 = vadd.f32 %v1825, %v1921
        %v1923 = vpop.f32.mrf.mxu0
        %v1924 = vpop.f32.mrf.mxu0
        %v1925 = vadd.f32 %v1828, %v1924
        %v1926 = vpop.f32.mrf.mxu0
        %1927 = vmatprep.mubr.bf16.mxu0 %v1490
        %1928 = vmatmul.mubr.bf16.gmra.mxu0 %v1489
        %v1929 = vpop.f32.mrf.mxu0
        %v1930 = vadd.f32 %v1833, %v1929
        %v1931 = vpop.f32.mrf.mxu0
        %v1932 = vpop.f32.mrf.mxu0
        %v1933 = vadd.f32 %v1836, %v1932
        %v1934 = vpop.f32.mrf.mxu0
        %1935 = vmatprep.mubr.bf16.mxu0 %v1494
        %1936 = vmatmul.mubr.bf16.gmra.mxu0 %v1493
        %v1937 = vpop.f32.mrf.mxu0
        %v1938 = vadd.f32 %v1841, %v1937
        %v1939 = vpop.f32.mrf.mxu0
        %v1940 = vpop.f32.mrf.mxu0
        %v1941 = vadd.f32 %v1844, %v1940
        %v1942 = vpop.f32.mrf.mxu0
        %1943 = vmatprep.mubr.bf16.mxu0 %v1498
        %1944 = vmatmul.mubr.bf16.gmra.mxu0 %v1497
        %v1945 = vpop.f32.mrf.mxu0
        %v1946 = vadd.f32 %v1849, %v1945
        %v1947 = vpop.f32.mrf.mxu0
        %v1948 = vpop.f32.mrf.mxu0
        %v1949 = vadd.f32 %v1852, %v1948
        %v1950 = vpop.f32.mrf.mxu0
        %1951 = vmatprep.mubr.bf16.mxu0 %v1502
        %1952 = vmatmul.mubr.bf16.gmra.mxu0 %v1501
        %v1953 = vpop.f32.mrf.mxu0
        %v1954 = vadd.f32 %v1857, %v1953
        %v1955 = vpop.f32.mrf.mxu0
        %v1956 = vpop.f32.mrf.mxu0
        %v1957 = vadd.f32 %v1860, %v1956
        %v1958 = vpop.f32.mrf.mxu0
        %1959 = vdwg.mxu0
        %v1960 = vmax.f32 %v1898, 0.0
        %v1961 = vmax.f32 %v1901, 0.0
        %v1962 = vmax.f32 %v1906, 0.0
        %v1963 = vmax.f32 %v1909, 0.0
        %v1964 = vmax.f32 %v1914, 0.0
        %v1965 = vmax.f32 %v1917, 0.0
        %v1966 = vmax.f32 %v1922, 0.0
        %v1967 = vmax.f32 %v1925, 0.0
        %v1968 = vmax.f32 %v1930, 0.0
        %v1969 = vmax.f32 %v1933, 0.0
        %v1970 = vmax.f32 %v1938, 0.0
        %v1971 = vmax.f32 %v1941, 0.0
        %v1972 = vmax.f32 %v1946, 0.0
        %v1973 = vmax.f32 %v1949, 0.0
        %v1974 = vmax.f32 %v1954, 0.0
        %v1975 = vmax.f32 %v1957, 0.0
        %v1976 = vld [vmem:[%s7] sm:$0x1]
        %v1977 = vpack.c.bf16 %v1961, %v1960
        %v1978 = vpack.c.bf16 %v1963, %v1962
        %v1979 = vpack.c.bf16 %v1965, %v1964
        %v1980 = vpack.c.bf16 %v1967, %v1966
        %v1981 = vpack.c.bf16 %v1969, %v1968
        %v1982 = vpack.c.bf16 %v1971, %v1970
        %v1983 = vpack.c.bf16 %v1973, %v1972
        %v1984 = vpack.c.bf16 %v1975, %v1974
        %s1985 = sld [smem:[#allocation2]]
        %v1986 = vstv %s1985
        %1987 = vmatprep.subr.bf16.mxu0 0
        %1988 = vmatpush1.bf16.xpose.msra.mxu0 %v1984
        %1989 = vmatprep.subr.bf16.mxu0 0
        %1990 = vmatpush1.bf16.xpose.msra.mxu0 %v1983
        %1991 = vmatprep.subr.bf16.mxu0 0
        %1992 = vmatpush1.bf16.xpose.msra.mxu0 %v1982
        %1993 = vmatprep.subr.bf16.mxu0 0
        %1994 = vmatpush1.bf16.xpose.msra.mxu0 %v1981
        %1995 = vmatprep.subr.bf16.mxu0 0
        %1996 = vmatpush1.bf16.xpose.msra.mxu0 %v1980
        %1997 = vmatprep.subr.bf16.mxu0 0
        %1998 = vmatpush1.bf16.xpose.msra.mxu0 %v1979
        %1999 = vmatprep.subr.bf16.mxu0 0
        %2000 = vmatpush1.bf16.xpose.msra.mxu0 %v1978
        %2001 = vmatprep.subr.bf16.mxu0 0
        %2002 = vmatpush1.bf16.xpose.msra.mxu0 %v1977
        %2003 = vmatprep.subr.bf16.mxu0 0
        %2004 = vmatpush2.bf16.xpose.msra.mxu0 0
        %2005 = vmatprep.subr.bf16.mxu0 0
        %2006 = vmatpush2.bf16.xpose.msra.mxu0 0
        %2007 = vmatprep.subr.bf16.mxu0 0
        %2008 = vmatpush2.bf16.xpose.msra.mxu0 0
        %2009 = vmatprep.subr.bf16.mxu0 0
        %2010 = vmatpush2.bf16.xpose.msra.mxu0 0
        %2011 = vmatprep.subr.bf16.mxu0 0
        %2012 = vmatpush2.bf16.xpose.msra.mxu0 0
        %2013 = vmatprep.subr.bf16.mxu0 0
        %2014 = vmatpush2.bf16.xpose.msra.mxu0 0
        %2015 = vmatprep.subr.bf16.mxu0 0
        %2016 = vmatpush2.bf16.xpose.msra.mxu0 0
        %2017 = vmatprep.subr.bf16.mxu0 0
        %2018 = vmatpush2.bf16.xpose.msra.mxu0 0
        %2019 = vmatprep.mubr.bf16.mxu0 0
        %2020 = vmatmul.mubr.bf16.gmra.mxu0 %v1976
        %v2021 = vpop.f32.mrf.mxu0
        %v2022 = vadd.f32 %v1986, %v2021
        %v2023 = vpop.f32.mrf.mxu0
        %v2024 = vpop.f32.mrf.mxu0
        %v2025 = vpop.f32.mrf.mxu0
        %2026 = vdwg.mxu0
        %v2027 = vmul.f32 %v2022, 0.5
        %v2028 = vtanh.pop %v2027
        %v2029 = vadd.f32 %v2028, 1.0
        %v2030 = vmul.f32 %v2029, 0.5
        %2031 = vst [vmem:[%s433] sm:$0x1] %v2030
        %s2032 = sand.u32 %s238, 1
        %s2033 = scalar_lea.sflag [#allocation5], %s2032
        %s2034 = sand.u32 %s238, 1
        %s2035 = scalar_lea.vmem [#allocation12], %s2034
        // Predicated region
        $region77: #{tpu_custom_call.1} parent=55 // pred_check
          %p2036 = pneg %p248
        $region78: #{tpu_custom_call.1} parent=55 // pred_check_branch
          %2038 = sbr.rel (%p2036) target = $region80
        $region79: #{tpu_custom_call.1} parent=55 // pred_region
          %s2040 = ssub.s32 16, 16
          %2041 = vsyncadd %s2033, %s2040
          %s2042 = smul.addr %s31, 16
          %s2043 = scalar_lea.hbm %s9, %s2042
          %s2045 = sshll.u32 %s2035, 4
          %s2046 = int_to_ptr.vmem [resolvable:$true] %s2045
          %2048 = dma.vmem_to_hbm [thread:$0]  %s2046, 16, %s2043, %s2033
        $region80: #{tpu_custom_call.1} parent=55 // pred_fallthru
          _
      $region56: #{tpu_custom_call.1} parent=5 // pred_fallthru
        _
      %p2049 = scmp.le.s32.totalorder 2, %s26
      // Predicated region
      $region81: #{tpu_custom_call.1} parent=5 // pred_check
        %p2050 = pneg %p2049
      $region82: #{tpu_custom_call.1} parent=5 // pred_check_branch
        %2052 = sbr.rel (%p2050) target = $region84
      $region83: #{tpu_custom_call.1} parent=5 // pred_region
        %s2053 = ssub.s32 %s26, 2
        // Predicated region
        $region85: #{tpu_custom_call.1} parent=83 // pred_check
          %p2054 = pneg %p254
        $region86: #{tpu_custom_call.1} parent=83 // pred_check_branch
          %2056 = sbr.rel (%p2054) target = $region88
        $region87: #{tpu_custom_call.1} parent=83 // pred_region
          %s2057 = sand.u32 %s239, 1
          %s2058 = scalar_lea.sflag [#allocation5], %s2057
          %s2059 = sand.u32 %s239, 1
          %s2060 = scalar_lea.vmem [#allocation12], %s2059
          %2061 = dma.done %s2058, 16
        $region88: #{tpu_custom_call.1} parent=83 // pred_fallthru
          _
      $region84: #{tpu_custom_call.1} parent=5 // pred_fallthru
        _
    $region6: #{tpu_custom_call.1} parent=1 // loop_footer
      %s30 = sadd.s32 1, %s26
    $region7: #{tpu_custom_call.1} parent=1 // loop_footer_branch
      %25 = sbr.rel target = $region3
    $region8: #{tpu_custom_call.1} parent=1 // loop_exit
      _
    %2062 = vsyncpa [#allocation4], 1
    %s2063 = scalar_lea.sflag [#allocation4], 1
    %2064 = vsyncpa %s2063, 1
    %2065 = vsyncpa [#allocation7], 1
    %s2066 = scalar_lea.sflag [#allocation7], 1
    %2067 = vsyncpa %s2066, 1
    %2068 = vsyncpa [#allocation10], 1
    %2069 = vsyncpa [#allocation5], 1
    %s2070 = scalar_lea.sflag [#allocation5], 1
    %2071 = vsyncpa %s2070, 1

</llo_original>
